<compile_context>
chip_gen: v5e
topology: v5e:2x2
jax: 0.10.0
libtpu: 0.0.40
codegen_flags: <defaults>
</compile_context>

<pallas_src>
import functools
import math

import jax
import jax.numpy as jnp
from jax.experimental import pallas as pl
from jax.experimental.pallas import tpu as pltpu


def _layer_norm(x, gamma, beta, eps=1e-5):
    mean = jnp.mean(x, axis=-1, keepdims=True)
    var = jnp.mean((x - mean) ** 2, axis=-1, keepdims=True)
    inv = jax.lax.rsqrt(var + eps)
    return (x - mean) * inv * gamma + beta


def _encoder_kernel(x_ref,
                    wqkv_ref, bqkv_ref,          # fused QKV projection (scale pre-folded)
                    wo_ref, bo_ref,              # output projection (full D x D)
                    w1_ref, b1_ref, w2_ref, b2_ref,
                    g1_ref, be1_ref, g2_ref, be2_ref,
                    out_ref,
                    ctx_ref,                     # (M, D) bf16 VMEM scratch: assembled heads
                    *, num_heads: int, kv_chunk: int, f_chunk: int):
    Bt, S, D = x_ref.shape
    M = Bt * S
    hd = D // num_heads
    F = w1_ref.shape[1]

    # tokens: collapse leading dims only (lane dim untouched -> cheap reshape)
    x = x_ref[...].astype(jnp.float32).reshape(M, D)
    xb = x.astype(jnp.bfloat16)

    # ---- fused Q/K/V projection: one MXU matmul, one bias add ---------------
    qkv = jnp.dot(xb, wqkv_ref[...], preferred_element_type=jnp.float32)
    qkv = (qkv + bqkv_ref[...]).reshape(Bt, S, 3 * D)

    # ---- multi-head self-attention with flash-style online softmax over KV --
    n_kv = S // kv_chunk
    for h in range(num_heads):                       # static, small
        lo = h * hd
        q_h = qkv[:, :, lo:lo + hd].astype(jnp.bfloat16)            # (Bt, S, hd)

        m_i = jnp.full((Bt, S, 1), -1e30, jnp.float32)
        l_i = jnp.zeros((Bt, S, 1), jnp.float32)
        acc = jnp.zeros((Bt, S, hd), jnp.float32)
        for j in range(n_kv):                        # static KV-chunk loop
            k0 = j * kv_chunk
            k_h = qkv[:, k0:k0 + kv_chunk, D + lo:D + lo + hd].astype(jnp.bfloat16)
            v_h = qkv[:, k0:k0 + kv_chunk, 2 * D + lo:2 * D + lo + hd].astype(jnp.bfloat16)

            # QK^T contracting last dims (no transpose); 1/sqrt(hd) already in Wq
            s = jnp.einsum('bqd,bkd->bqk', q_h, k_h,
                           preferred_element_type=jnp.float32)      # (Bt, S, Tk)
            m_new = jnp.maximum(m_i, jnp.max(s, axis=-1, keepdims=True))
            alpha = jnp.exp(m_i - m_new)
            p = jnp.exp(s - m_new)
            l_i = alpha * l_i + jnp.sum(p, axis=-1, keepdims=True)
            acc = alpha * acc + jnp.einsum('bqk,bkd->bqd', p.astype(jnp.bfloat16),
                                           v_h, preferred_element_type=jnp.float32)
            m_i = m_new

        o_h = acc * pl.reciprocal(l_i, approx=False)                # (Bt, S, hd)
        # assemble heads along the lane axis in scratch (no concat, no K=hd matmuls)
        ctx_ref[:, lo:lo + hd] = o_h.reshape(M, hd).astype(jnp.bfloat16)

    # ---- single full-K output projection (fills the MXU) --------------------
    attn = jnp.dot(ctx_ref[...], wo_ref[...],
                   preferred_element_type=jnp.float32) + bo_ref[...]

    # ---- residual + LayerNorm 1 ---------------------------------------------
    h1 = _layer_norm(x + attn, g1_ref[...], be1_ref[...])

    # ---- feed-forward MLP tiled over F (bf16 operands, f32 accumulation) ----
    h1b = h1.astype(jnp.bfloat16)
    ff = jnp.zeros((M, D), jnp.float32)
    for f0 in range(0, F, f_chunk):                  # static chunk loop
        z = jnp.dot(h1b, w1_ref[:, f0:f0 + f_chunk],
                    preferred_element_type=jnp.float32) + b1_ref[:, f0:f0 + f_chunk]
        z = jnp.maximum(z, 0.0)                      # ReLU (dropout p=0 -> identity)
        ff = ff + jnp.dot(z.astype(jnp.bfloat16), w2_ref[f0:f0 + f_chunk, :],
                          preferred_element_type=jnp.float32)
    ff = ff + b2_ref[...]

    # ---- residual + LayerNorm 2 ---------------------------------------------
    h2 = _layer_norm(h1 + ff, g2_ref[...], be2_ref[...])
    out_ref[...] = h2.reshape(Bt, S, D).astype(out_ref.dtype)


# ------------------------- wrapper-side helpers -----------------------------
def _pick_block_batch(B, S, target_rows=1024, min_steps=2):
    """Largest divisor of B with Bt*S <= target_rows AND B//Bt >= min_steps
    (so both v7x TensorCores always get a 'parallel' grid step)."""
    max_bt = B // min_steps if B >= min_steps else B
    max_bt = max(1, max_bt)
    bt = 1
    for cand in range(1, max_bt + 1):
        if B % cand == 0 and cand * S <= target_rows:
            bt = cand
    return bt


def _pick_kv_chunk(S, target=512):
    if S <= target:
        return S
    for c in range(target, 0, -1):
        if S % c == 0 and c % 128 == 0:
            return c
    return S


def _pick_f_chunk(F, target=1024):
    if F <= target:
        return F
    for c in range(target, 255, -1):
        if F % c == 0 and c % 256 == 0:
            return c
    return F


def _vmem_limit_bytes(default=64 * 1024 * 1024):
    """Budget ~75% of physical VMEM, capped at 100 MiB (=> ~48 MiB on v7x,
    ~96 MiB on v5e/v6e). Falls back to 64 MiB if the query is unavailable."""
    try:
        cap = int(pltpu.get_tpu_info().vmem_capacity_bytes)
        return int(min(100 * 1024 * 1024, 0.75 * cap))
    except Exception:
        return default


def pack_encoder_params(params, num_heads):
    """Pack weights ONCE (not per forward call): fuse QKV, fold attention scale
    into Wq/bq, cast matmul weights to bf16."""
    D = params["wq"].shape[0]
    hd = D // num_heads
    scale = 1.0 / math.sqrt(hd)
    wdt = jnp.bfloat16
    wqkv = jnp.concatenate(
        [params["wq"] * scale, params["wk"], params["wv"]], axis=1).astype(wdt)  # (D, 3D)
    bqkv = jnp.concatenate(
        [params["bq"] * scale, params["bk"], params["bv"]], axis=1).astype(jnp.float32)
    return dict(
        wqkv=wqkv, bqkv=bqkv,
        wo=params["wo"].astype(wdt), bo=params["bo"].astype(jnp.float32),
        w1=params["w1"].astype(wdt), b1=params["b1"].astype(jnp.float32),
        w2=params["w2"].astype(wdt), b2=params["b2"].astype(jnp.float32),
        gamma1=params["gamma1"], beta1=params["beta1"],
        gamma2=params["gamma2"], beta2=params["beta2"],
    )


def encoder_block(x, packed, *, num_heads: int, block_batch=None):
    B, S, D = x.shape
    F = packed["w1"].shape[1]
    Bt = block_batch if block_batch is not None else _pick_block_batch(B, S)
    assert B % Bt == 0
    kv_chunk = _pick_kv_chunk(S)
    f_chunk = _pick_f_chunk(F)

    const2d = lambda shape: pl.BlockSpec(shape, lambda b: (0, 0))

    in_specs = [
        pl.BlockSpec((Bt, S, D), lambda b: (b, 0, 0)),    # x (batch-tiled)
        const2d((D, 3 * D)), const2d((1, 3 * D)),         # wqkv, bqkv
        const2d((D, D)), const2d((1, D)),                 # wo, bo
        const2d((D, F)), const2d((1, F)),                 # w1, b1
        const2d((F, D)), const2d((1, D)),                 # w2, b2
        const2d((1, D)), const2d((1, D)),                 # gamma1, beta1
        const2d((1, D)), const2d((1, D)),                 # gamma2, beta2
    ]

    # advisory cost hint for XLA scheduling around the custom call
    flops = int(2 * B * S * D * (3 * D)        # QKV projection
                + 4 * B * S * S * D            # QK^T + PV over all heads
                + 2 * B * S * D * D            # output projection
                + 4 * B * S * D * F)           # MLP
    transcendentals = int(B * num_heads * S * S)
    bytes_accessed = int(2 * B * S * D * 4                         # x in + out (f32)
                         + 2 * (3 * D * D + D * D + 2 * D * F)     # bf16 weights
                         + 4 * (3 * D + 5 * D + F))                # biases / LN params

    kernel = functools.partial(_encoder_kernel, num_heads=num_heads,
                               kv_chunk=kv_chunk, f_chunk=f_chunk)
    return pl.pallas_call(
        kernel,
        out_shape=jax.ShapeDtypeStruct((B, S, D), x.dtype),
        grid=(B // Bt,),
        in_specs=in_specs,
        out_specs=pl.BlockSpec((Bt, S, D), lambda b: (b, 0, 0)),
        scratch_shapes=[pltpu.VMEM((Bt * S, D), jnp.bfloat16)],
        compiler_params=pltpu.CompilerParams(
            dimension_semantics=("parallel",),
            vmem_limit_bytes=_vmem_limit_bytes()),
        cost_estimate=pl.CostEstimate(flops=flops,
                                      transcendentals=transcendentals,
                                      bytes_accessed=bytes_accessed),
    )(x, packed["wqkv"], packed["bqkv"], packed["wo"], packed["bo"],
      packed["w1"], packed["b1"], packed["w2"], packed["b2"],
      packed["gamma1"], packed["beta1"], packed["gamma2"], packed["beta2"])


# ---------------- pure-JAX reference for verification ----------------------
def encoder_block_ref(x, params, *, num_heads: int):
    B, S, D = x.shape
    hd = D // num_heads
    scale = 1.0 / math.sqrt(hd)

    q = x @ params["wq"] + params["bq"]
    k = x @ params["wk"] + params["bk"]
    v = x @ params["wv"] + params["bv"]
    q = q.reshape(B, S, num_heads, hd).transpose(0, 2, 1, 3)
    k = k.reshape(B, S, num_heads, hd).transpose(0, 2, 1, 3)
    v = v.reshape(B, S, num_heads, hd).transpose(0, 2, 1, 3)
    s = jnp.einsum("bhqd,bhkd->bhqk", q, k) * scale
    p = jax.nn.softmax(s, axis=-1)
    o = jnp.einsum("bhqk,bhkd->bhqd", p, v).transpose(0, 2, 1, 3).reshape(B, S, D)
    attn = o @ params["wo"] + params["bo"]

    def ln(y, g, b, eps=1e-5):
        m = jnp.mean(y, -1, keepdims=True)
        var = jnp.mean((y - m) ** 2, -1, keepdims=True)
        return (y - m) * jax.lax.rsqrt(var + eps) * g + b

    h1 = ln(x + attn, params["gamma1"], params["beta1"])
    ff = jnp.maximum(h1 @ params["w1"] + params["b1"], 0.0) @ params["w2"] + params["b2"]
    return ln(h1 + ff, params["gamma2"], params["beta2"])


if __name__ == "__main__":
    B, S, D, H, F = 2, 8, 32, 4, 64   # batch, seq, input_dim, num_heads, ff_dim

    key = jax.random.PRNGKey(0)
    ks = jax.random.split(key, 16)
    init = lambda k, shape: (jax.random.normal(k, shape, jnp.float32) * 0.02)

    params = {
        "wq": init(ks[0], (D, D)), "bq": init(ks[1], (1, D)),
        "wk": init(ks[2], (D, D)), "bk": init(ks[3], (1, D)),
        "wv": init(ks[4], (D, D)), "bv": init(ks[5], (1, D)),
        "wo": init(ks[6], (D, D)), "bo": init(ks[7], (1, D)),
        "w1": init(ks[8], (D, F)), "b1": init(ks[9], (1, F)),
        "w2": init(ks[10], (F, D)), "b2": init(ks[11], (1, D)),
        "gamma1": jnp.ones((1, D), jnp.float32), "beta1": jnp.zeros((1, D), jnp.float32),
        "gamma2": jnp.ones((1, D), jnp.float32), "beta2": jnp.zeros((1, D), jnp.float32),
    }

    x = jax.random.normal(ks[12], (B, S, D), jnp.float32)

    # pack weights once (hoisted out of the per-call path)
    packed = pack_encoder_params(params, num_heads=H)

    out = encoder_block(x, packed, num_heads=H)
    out = jax.block_until_ready(out)

    ref = encoder_block_ref(x, params, num_heads=H)
    assert out.shape == (B, S, D)
    # bf16 MXU operands (f32 accumulation) -> loosened tolerance
    assert jnp.allclose(out, ref, rtol=2e-2, atol=2e-2), "mismatch vs reference"

    # TODO(synk): dropout (p>0) and the optional attention mask path are not
    # implemented (module is exercised with dropout=0.0 and mask=None).
    print("KERNEL_OK")
</pallas_src>

<mosaic_0001>
module attributes {stable_mosaic.version = 11 : i64} {
  func.func @_encoder_kernel(%arg0: i32, %arg1: memref<1x8x32xf32, #tpu.memory_space<vmem>>, %arg2: memref<32x96xbf16, #tpu.memory_space<vmem>>, %arg3: memref<1x96xf32, #tpu.memory_space<vmem>>, %arg4: memref<32x32xbf16, #tpu.memory_space<vmem>>, %arg5: memref<1x32xf32, #tpu.memory_space<vmem>>, %arg6: memref<32x64xbf16, #tpu.memory_space<vmem>>, %arg7: memref<1x64xf32, #tpu.memory_space<vmem>>, %arg8: memref<64x32xbf16, #tpu.memory_space<vmem>>, %arg9: memref<1x32xf32, #tpu.memory_space<vmem>>, %arg10: memref<1x32xf32, #tpu.memory_space<vmem>>, %arg11: memref<1x32xf32, #tpu.memory_space<vmem>>, %arg12: memref<1x32xf32, #tpu.memory_space<vmem>>, %arg13: memref<1x32xf32, #tpu.memory_space<vmem>>, %arg14: memref<1x8x32xf32, #tpu.memory_space<vmem>>, %arg15: memref<8x32xbf16, #tpu.memory_space<vmem>>) attributes {dimension_semantics = [#tpu.dimension_semantics<parallel>], iteration_bounds = array<i64: 2>, scalar_prefetch = 0 : i64, scratch_operands = 1 : i64, tpu.core_type = #tpu.core_type<tc>, window_params = [{transform_indices = @transform_0, window_bounds = array<i64: 1, 8, 32>}, {pipeline_mode = #tpu.pipeline_mode<synchronous>, transform_indices = @transform_1, window_bounds = array<i64: 32, 96>}, {pipeline_mode = #tpu.pipeline_mode<synchronous>, transform_indices = @transform_2, window_bounds = array<i64: 1, 96>}, {pipeline_mode = #tpu.pipeline_mode<synchronous>, transform_indices = @transform_3, window_bounds = array<i64: 32, 32>}, {pipeline_mode = #tpu.pipeline_mode<synchronous>, transform_indices = @transform_4, window_bounds = array<i64: 1, 32>}, {pipeline_mode = #tpu.pipeline_mode<synchronous>, transform_indices = @transform_5, window_bounds = array<i64: 32, 64>}, {pipeline_mode = #tpu.pipeline_mode<synchronous>, transform_indices = @transform_6, window_bounds = array<i64: 1, 64>}, {pipeline_mode = #tpu.pipeline_mode<synchronous>, transform_indices = @transform_7, window_bounds = array<i64: 64, 32>}, {pipeline_mode = #tpu.pipeline_mode<synchronous>, transform_indices = @transform_8, window_bounds = array<i64: 1, 32>}, {pipeline_mode = #tpu.pipeline_mode<synchronous>, transform_indices = @transform_9, window_bounds = array<i64: 1, 32>}, {pipeline_mode = #tpu.pipeline_mode<synchronous>, transform_indices = @transform_10, window_bounds = array<i64: 1, 32>}, {pipeline_mode = #tpu.pipeline_mode<synchronous>, transform_indices = @transform_11, window_bounds = array<i64: 1, 32>}, {pipeline_mode = #tpu.pipeline_mode<synchronous>, transform_indices = @transform_12, window_bounds = array<i64: 1, 32>}, {transform_indices = @transform_13, window_bounds = array<i64: 1, 8, 32>}]} {
    %c0 = arith.constant 0 : index
    %c0_0 = arith.constant 0 : index
    %c0_1 = arith.constant 0 : index
    %0 = vector.load %arg1[%c0, %c0_0, %c0_1] : memref<1x8x32xf32, #tpu.memory_space<vmem>>, vector<1x8x32xf32>
    %1 = vector.shape_cast %0 : vector<1x8x32xf32> to vector<8x32xf32>
    %2 = arith.truncf %1 : vector<8x32xf32> to vector<8x32xbf16>
    %c0_2 = arith.constant 0 : index
    %c0_3 = arith.constant 0 : index
    %3 = vector.load %arg2[%c0_2, %c0_3] : memref<32x96xbf16, #tpu.memory_space<vmem>>, vector<32x96xbf16>
    %cst = arith.constant dense<0.000000e+00> : vector<8x96xf32>
    %4 = tpu.matmul %2, %3, %cst {dimension_numbers = #tpu.dot_dimension_numbers<[1], [0], [0], [1], [0, 0, 1, 1], [], []>} : vector<8x32xbf16>, vector<32x96xbf16>, vector<8x96xf32> -> vector<8x96xf32>
    %c0_4 = arith.constant 0 : index
    %c0_5 = arith.constant 0 : index
    %5 = vector.load %arg3[%c0_4, %c0_5] : memref<1x96xf32, #tpu.memory_space<vmem>>, vector<1x96xf32>
    %6 = vector.broadcast %5 : vector<1x96xf32> to vector<8x96xf32>
    %7 = arith.addf %4, %6 : vector<8x96xf32>
    %8 = vector.shape_cast %7 : vector<8x96xf32> to vector<1x8x96xf32>
    %9 = vector.extract_strided_slice %8 {offsets = [0, 0, 0], sizes = [1, 8, 8], strides = [1, 1, 1]} : vector<1x8x96xf32> to vector<1x8x8xf32>
    %10 = arith.truncf %9 : vector<1x8x8xf32> to vector<1x8x8xbf16>
    %cst_6 = arith.constant -1.000000e+30 : f32
    %11 = vector.broadcast %cst_6 : f32 to vector<1x8x1xf32>
    %cst_7 = arith.constant 0.000000e+00 : f32
    %12 = vector.broadcast %cst_7 : f32 to vector<1x8x1xf32>
    %cst_8 = arith.constant 0.000000e+00 : f32
    %13 = vector.broadcast %cst_8 : f32 to vector<1x8x8xf32>
    %14 = vector.extract_strided_slice %8 {offsets = [0, 0, 32], sizes = [1, 8, 8], strides = [1, 1, 1]} : vector<1x8x96xf32> to vector<1x8x8xf32>
    %15 = arith.truncf %14 : vector<1x8x8xf32> to vector<1x8x8xbf16>
    %16 = vector.extract_strided_slice %8 {offsets = [0, 0, 64], sizes = [1, 8, 8], strides = [1, 1, 1]} : vector<1x8x96xf32> to vector<1x8x8xf32>
    %17 = arith.truncf %16 : vector<1x8x8xf32> to vector<1x8x8xbf16>
    "tpu.trace_start"() <{level = 10 : i32, message = "bqd,bkd->bqk"}> : () -> ()
    %cst_9 = arith.constant dense<0.000000e+00> : vector<1x8x8xf32>
    %18 = tpu.matmul %10, %15, %cst_9 {dimension_numbers = #tpu.dot_dimension_numbers<[2], [2], [1], [1], [0, 0, 0, 1, 1, 1], [0], [0]>} : vector<1x8x8xbf16>, vector<1x8x8xbf16>, vector<1x8x8xf32> -> vector<1x8x8xf32>
    "tpu.trace_stop"() : () -> ()
    %cst_10 = arith.constant dense<0xFF800000> : vector<1x8xf32>
    %19 = vector.multi_reduction <maximumf>, %18, %cst_10 [2] : vector<1x8x8xf32> to vector<1x8xf32>
    %20 = vector.shape_cast %19 : vector<1x8xf32> to vector<1x8x1xf32>
    %21 = arith.maximumf %11, %20 : vector<1x8x1xf32>
    %22 = arith.subf %11, %21 : vector<1x8x1xf32>
    %23 = math.exp %22 : vector<1x8x1xf32>
    %24 = vector.broadcast %21 : vector<1x8x1xf32> to vector<1x8x8xf32>
    %25 = arith.subf %18, %24 : vector<1x8x8xf32>
    %26 = math.exp %25 : vector<1x8x8xf32>
    %27 = arith.mulf %23, %12 : vector<1x8x1xf32>
    %cst_11 = arith.constant dense<0.000000e+00> : vector<1x8xf32>
    %28 = vector.multi_reduction <add>, %26, %cst_11 [2] : vector<1x8x8xf32> to vector<1x8xf32>
    %29 = vector.shape_cast %28 : vector<1x8xf32> to vector<1x8x1xf32>
    %30 = arith.addf %27, %29 : vector<1x8x1xf32>
    %31 = vector.broadcast %23 : vector<1x8x1xf32> to vector<1x8x8xf32>
    %32 = arith.mulf %31, %13 : vector<1x8x8xf32>
    %33 = arith.truncf %26 : vector<1x8x8xf32> to vector<1x8x8xbf16>
    "tpu.trace_start"() <{level = 10 : i32, message = "bqk,bkd->bqd"}> : () -> ()
    %cst_12 = arith.constant dense<0.000000e+00> : vector<1x8x8xf32>
    %34 = tpu.matmul %33, %17, %cst_12 {dimension_numbers = #tpu.dot_dimension_numbers<[2], [1], [1], [2], [0, 0, 0, 1, 1, 2], [0], [0]>} : vector<1x8x8xbf16>, vector<1x8x8xbf16>, vector<1x8x8xf32> -> vector<1x8x8xf32>
    "tpu.trace_stop"() : () -> ()
    %35 = arith.addf %32, %34 : vector<1x8x8xf32>
    %36 = tpu.reciprocal %30 : vector<1x8x1xf32> -> vector<1x8x1xf32>
    %37 = vector.broadcast %36 : vector<1x8x1xf32> to vector<1x8x8xf32>
    %38 = arith.mulf %35, %37 : vector<1x8x8xf32>
    %39 = vector.shape_cast %38 : vector<1x8x8xf32> to vector<8x8xf32>
    %40 = arith.truncf %39 : vector<8x8xf32> to vector<8x8xbf16>
    %c0_13 = arith.constant 0 : index
    %c0_14 = arith.constant 0 : index
    %41 = vector.load %arg15[%c0_13, %c0_14] : memref<8x32xbf16, #tpu.memory_space<vmem>>, vector<8x8xbf16>
    tpu.vector_store %arg15[%c0_13, %c0_14], %40 {strides = array<i32>} : memref<8x32xbf16, #tpu.memory_space<vmem>>, vector<8x8xbf16>,
    %42 = vector.extract_strided_slice %8 {offsets = [0, 0, 8], sizes = [1, 8, 8], strides = [1, 1, 1]} : vector<1x8x96xf32> to vector<1x8x8xf32>
    %43 = arith.truncf %42 : vector<1x8x8xf32> to vector<1x8x8xbf16>
    %cst_15 = arith.constant -1.000000e+30 : f32
    %44 = vector.broadcast %cst_15 : f32 to vector<1x8x1xf32>
    %cst_16 = arith.constant 0.000000e+00 : f32
    %45 = vector.broadcast %cst_16 : f32 to vector<1x8x1xf32>
    %cst_17 = arith.constant 0.000000e+00 : f32
    %46 = vector.broadcast %cst_17 : f32 to vector<1x8x8xf32>
    %47 = vector.extract_strided_slice %8 {offsets = [0, 0, 40], sizes = [1, 8, 8], strides = [1, 1, 1]} : vector<1x8x96xf32> to vector<1x8x8xf32>
    %48 = arith.truncf %47 : vector<1x8x8xf32> to vector<1x8x8xbf16>
    %49 = vector.extract_strided_slice %8 {offsets = [0, 0, 72], sizes = [1, 8, 8], strides = [1, 1, 1]} : vector<1x8x96xf32> to vector<1x8x8xf32>
    %50 = arith.truncf %49 : vector<1x8x8xf32> to vector<1x8x8xbf16>
    "tpu.trace_start"() <{level = 10 : i32, message = "bqd,bkd->bqk"}> : () -> ()
    %cst_18 = arith.constant dense<0.000000e+00> : vector<1x8x8xf32>
    %51 = tpu.matmul %43, %48, %cst_18 {dimension_numbers = #tpu.dot_dimension_numbers<[2], [2], [1], [1], [0, 0, 0, 1, 1, 1], [0], [0]>} : vector<1x8x8xbf16>, vector<1x8x8xbf16>, vector<1x8x8xf32> -> vector<1x8x8xf32>
    "tpu.trace_stop"() : () -> ()
    %cst_19 = arith.constant dense<0xFF800000> : vector<1x8xf32>
    %52 = vector.multi_reduction <maximumf>, %51, %cst_19 [2] : vector<1x8x8xf32> to vector<1x8xf32>
    %53 = vector.shape_cast %52 : vector<1x8xf32> to vector<1x8x1xf32>
    %54 = arith.maximumf %44, %53 : vector<1x8x1xf32>
    %55 = arith.subf %44, %54 : vector<1x8x1xf32>
    %56 = math.exp %55 : vector<1x8x1xf32>
    %57 = vector.broadcast %54 : vector<1x8x1xf32> to vector<1x8x8xf32>
    %58 = arith.subf %51, %57 : vector<1x8x8xf32>
    %59 = math.exp %58 : vector<1x8x8xf32>
    %60 = arith.mulf %56, %45 : vector<1x8x1xf32>
    %cst_20 = arith.constant dense<0.000000e+00> : vector<1x8xf32>
    %61 = vector.multi_reduction <add>, %59, %cst_20 [2] : vector<1x8x8xf32> to vector<1x8xf32>
    %62 = vector.shape_cast %61 : vector<1x8xf32> to vector<1x8x1xf32>
    %63 = arith.addf %60, %62 : vector<1x8x1xf32>
    %64 = vector.broadcast %56 : vector<1x8x1xf32> to vector<1x8x8xf32>
    %65 = arith.mulf %64, %46 : vector<1x8x8xf32>
    %66 = arith.truncf %59 : vector<1x8x8xf32> to vector<1x8x8xbf16>
    "tpu.trace_start"() <{level = 10 : i32, message = "bqk,bkd->bqd"}> : () -> ()
    %cst_21 = arith.constant dense<0.000000e+00> : vector<1x8x8xf32>
    %67 = tpu.matmul %66, %50, %cst_21 {dimension_numbers = #tpu.dot_dimension_numbers<[2], [1], [1], [2], [0, 0, 0, 1, 1, 2], [0], [0]>} : vector<1x8x8xbf16>, vector<1x8x8xbf16>, vector<1x8x8xf32> -> vector<1x8x8xf32>
    "tpu.trace_stop"() : () -> ()
    %68 = arith.addf %65, %67 : vector<1x8x8xf32>
    %69 = tpu.reciprocal %63 : vector<1x8x1xf32> -> vector<1x8x1xf32>
    %70 = vector.broadcast %69 : vector<1x8x1xf32> to vector<1x8x8xf32>
    %71 = arith.mulf %68, %70 : vector<1x8x8xf32>
    %72 = vector.shape_cast %71 : vector<1x8x8xf32> to vector<8x8xf32>
    %73 = arith.truncf %72 : vector<8x8xf32> to vector<8x8xbf16>
    %c0_22 = arith.constant 0 : index
    %c8 = arith.constant 8 : index
    %74 = vector.load %arg15[%c0_22, %c8] : memref<8x32xbf16, #tpu.memory_space<vmem>>, vector<8x8xbf16>
    tpu.vector_store %arg15[%c0_22, %c8], %73 {strides = array<i32>} : memref<8x32xbf16, #tpu.memory_space<vmem>>, vector<8x8xbf16>,
    %75 = vector.extract_strided_slice %8 {offsets = [0, 0, 16], sizes = [1, 8, 8], strides = [1, 1, 1]} : vector<1x8x96xf32> to vector<1x8x8xf32>
    %76 = arith.truncf %75 : vector<1x8x8xf32> to vector<1x8x8xbf16>
    %cst_23 = arith.constant -1.000000e+30 : f32
    %77 = vector.broadcast %cst_23 : f32 to vector<1x8x1xf32>
    %cst_24 = arith.constant 0.000000e+00 : f32
    %78 = vector.broadcast %cst_24 : f32 to vector<1x8x1xf32>
    %cst_25 = arith.constant 0.000000e+00 : f32
    %79 = vector.broadcast %cst_25 : f32 to vector<1x8x8xf32>
    %80 = vector.extract_strided_slice %8 {offsets = [0, 0, 48], sizes = [1, 8, 8], strides = [1, 1, 1]} : vector<1x8x96xf32> to vector<1x8x8xf32>
    %81 = arith.truncf %80 : vector<1x8x8xf32> to vector<1x8x8xbf16>
    %82 = vector.extract_strided_slice %8 {offsets = [0, 0, 80], sizes = [1, 8, 8], strides = [1, 1, 1]} : vector<1x8x96xf32> to vector<1x8x8xf32>
    %83 = arith.truncf %82 : vector<1x8x8xf32> to vector<1x8x8xbf16>
    "tpu.trace_start"() <{level = 10 : i32, message = "bqd,bkd->bqk"}> : () -> ()
    %cst_26 = arith.constant dense<0.000000e+00> : vector<1x8x8xf32>
    %84 = tpu.matmul %76, %81, %cst_26 {dimension_numbers = #tpu.dot_dimension_numbers<[2], [2], [1], [1], [0, 0, 0, 1, 1, 1], [0], [0]>} : vector<1x8x8xbf16>, vector<1x8x8xbf16>, vector<1x8x8xf32> -> vector<1x8x8xf32>
    "tpu.trace_stop"() : () -> ()
    %cst_27 = arith.constant dense<0xFF800000> : vector<1x8xf32>
    %85 = vector.multi_reduction <maximumf>, %84, %cst_27 [2] : vector<1x8x8xf32> to vector<1x8xf32>
    %86 = vector.shape_cast %85 : vector<1x8xf32> to vector<1x8x1xf32>
    %87 = arith.maximumf %77, %86 : vector<1x8x1xf32>
    %88 = arith.subf %77, %87 : vector<1x8x1xf32>
    %89 = math.exp %88 : vector<1x8x1xf32>
    %90 = vector.broadcast %87 : vector<1x8x1xf32> to vector<1x8x8xf32>
    %91 = arith.subf %84, %90 : vector<1x8x8xf32>
    %92 = math.exp %91 : vector<1x8x8xf32>
    %93 = arith.mulf %89, %78 : vector<1x8x1xf32>
    %cst_28 = arith.constant dense<0.000000e+00> : vector<1x8xf32>
    %94 = vector.multi_reduction <add>, %92, %cst_28 [2] : vector<1x8x8xf32> to vector<1x8xf32>
    %95 = vector.shape_cast %94 : vector<1x8xf32> to vector<1x8x1xf32>
    %96 = arith.addf %93, %95 : vector<1x8x1xf32>
    %97 = vector.broadcast %89 : vector<1x8x1xf32> to vector<1x8x8xf32>
    %98 = arith.mulf %97, %79 : vector<1x8x8xf32>
    %99 = arith.truncf %92 : vector<1x8x8xf32> to vector<1x8x8xbf16>
    "tpu.trace_start"() <{level = 10 : i32, message = "bqk,bkd->bqd"}> : () -> ()
    %cst_29 = arith.constant dense<0.000000e+00> : vector<1x8x8xf32>
    %100 = tpu.matmul %99, %83, %cst_29 {dimension_numbers = #tpu.dot_dimension_numbers<[2], [1], [1], [2], [0, 0, 0, 1, 1, 2], [0], [0]>} : vector<1x8x8xbf16>, vector<1x8x8xbf16>, vector<1x8x8xf32> -> vector<1x8x8xf32>
    "tpu.trace_stop"() : () -> ()
    %101 = arith.addf %98, %100 : vector<1x8x8xf32>
    %102 = tpu.reciprocal %96 : vector<1x8x1xf32> -> vector<1x8x1xf32>
    %103 = vector.broadcast %102 : vector<1x8x1xf32> to vector<1x8x8xf32>
    %104 = arith.mulf %101, %103 : vector<1x8x8xf32>
    %105 = vector.shape_cast %104 : vector<1x8x8xf32> to vector<8x8xf32>
    %106 = arith.truncf %105 : vector<8x8xf32> to vector<8x8xbf16>
    %c0_30 = arith.constant 0 : index
    %c16 = arith.constant 16 : index
    %107 = vector.load %arg15[%c0_30, %c16] : memref<8x32xbf16, #tpu.memory_space<vmem>>, vector<8x8xbf16>
    tpu.vector_store %arg15[%c0_30, %c16], %106 {strides = array<i32>} : memref<8x32xbf16, #tpu.memory_space<vmem>>, vector<8x8xbf16>,
    %108 = vector.extract_strided_slice %8 {offsets = [0, 0, 24], sizes = [1, 8, 8], strides = [1, 1, 1]} : vector<1x8x96xf32> to vector<1x8x8xf32>
    %109 = arith.truncf %108 : vector<1x8x8xf32> to vector<1x8x8xbf16>
    %cst_31 = arith.constant -1.000000e+30 : f32
    %110 = vector.broadcast %cst_31 : f32 to vector<1x8x1xf32>
    %cst_32 = arith.constant 0.000000e+00 : f32
    %111 = vector.broadcast %cst_32 : f32 to vector<1x8x1xf32>
    %cst_33 = arith.constant 0.000000e+00 : f32
    %112 = vector.broadcast %cst_33 : f32 to vector<1x8x8xf32>
    %113 = vector.extract_strided_slice %8 {offsets = [0, 0, 56], sizes = [1, 8, 8], strides = [1, 1, 1]} : vector<1x8x96xf32> to vector<1x8x8xf32>
    %114 = arith.truncf %113 : vector<1x8x8xf32> to vector<1x8x8xbf16>
    %115 = vector.extract_strided_slice %8 {offsets = [0, 0, 88], sizes = [1, 8, 8], strides = [1, 1, 1]} : vector<1x8x96xf32> to vector<1x8x8xf32>
    %116 = arith.truncf %115 : vector<1x8x8xf32> to vector<1x8x8xbf16>
    "tpu.trace_start"() <{level = 10 : i32, message = "bqd,bkd->bqk"}> : () -> ()
    %cst_34 = arith.constant dense<0.000000e+00> : vector<1x8x8xf32>
    %117 = tpu.matmul %109, %114, %cst_34 {dimension_numbers = #tpu.dot_dimension_numbers<[2], [2], [1], [1], [0, 0, 0, 1, 1, 1], [0], [0]>} : vector<1x8x8xbf16>, vector<1x8x8xbf16>, vector<1x8x8xf32> -> vector<1x8x8xf32>
    "tpu.trace_stop"() : () -> ()
    %cst_35 = arith.constant dense<0xFF800000> : vector<1x8xf32>
    %118 = vector.multi_reduction <maximumf>, %117, %cst_35 [2] : vector<1x8x8xf32> to vector<1x8xf32>
    %119 = vector.shape_cast %118 : vector<1x8xf32> to vector<1x8x1xf32>
    %120 = arith.maximumf %110, %119 : vector<1x8x1xf32>
    %121 = arith.subf %110, %120 : vector<1x8x1xf32>
    %122 = math.exp %121 : vector<1x8x1xf32>
    %123 = vector.broadcast %120 : vector<1x8x1xf32> to vector<1x8x8xf32>
    %124 = arith.subf %117, %123 : vector<1x8x8xf32>
    %125 = math.exp %124 : vector<1x8x8xf32>
    %126 = arith.mulf %122, %111 : vector<1x8x1xf32>
    %cst_36 = arith.constant dense<0.000000e+00> : vector<1x8xf32>
    %127 = vector.multi_reduction <add>, %125, %cst_36 [2] : vector<1x8x8xf32> to vector<1x8xf32>
    %128 = vector.shape_cast %127 : vector<1x8xf32> to vector<1x8x1xf32>
    %129 = arith.addf %126, %128 : vector<1x8x1xf32>
    %130 = vector.broadcast %122 : vector<1x8x1xf32> to vector<1x8x8xf32>
    %131 = arith.mulf %130, %112 : vector<1x8x8xf32>
    %132 = arith.truncf %125 : vector<1x8x8xf32> to vector<1x8x8xbf16>
    "tpu.trace_start"() <{level = 10 : i32, message = "bqk,bkd->bqd"}> : () -> ()
    %cst_37 = arith.constant dense<0.000000e+00> : vector<1x8x8xf32>
    %133 = tpu.matmul %132, %116, %cst_37 {dimension_numbers = #tpu.dot_dimension_numbers<[2], [1], [1], [2], [0, 0, 0, 1, 1, 2], [0], [0]>} : vector<1x8x8xbf16>, vector<1x8x8xbf16>, vector<1x8x8xf32> -> vector<1x8x8xf32>
    "tpu.trace_stop"() : () -> ()
    %134 = arith.addf %131, %133 : vector<1x8x8xf32>
    %135 = tpu.reciprocal %129 : vector<1x8x1xf32> -> vector<1x8x1xf32>
    %136 = vector.broadcast %135 : vector<1x8x1xf32> to vector<1x8x8xf32>
    %137 = arith.mulf %134, %136 : vector<1x8x8xf32>
    %138 = vector.shape_cast %137 : vector<1x8x8xf32> to vector<8x8xf32>
    %139 = arith.truncf %138 : vector<8x8xf32> to vector<8x8xbf16>
    %c0_38 = arith.constant 0 : index
    %c24 = arith.constant 24 : index
    %140 = vector.load %arg15[%c0_38, %c24] : memref<8x32xbf16, #tpu.memory_space<vmem>>, vector<8x8xbf16>
    tpu.vector_store %arg15[%c0_38, %c24], %139 {strides = array<i32>} : memref<8x32xbf16, #tpu.memory_space<vmem>>, vector<8x8xbf16>,
    %c0_39 = arith.constant 0 : index
    %c0_40 = arith.constant 0 : index
    %141 = vector.load %arg15[%c0_39, %c0_40] : memref<8x32xbf16, #tpu.memory_space<vmem>>, vector<8x32xbf16>
    %c0_41 = arith.constant 0 : index
    %c0_42 = arith.constant 0 : index
    %142 = vector.load %arg4[%c0_41, %c0_42] : memref<32x32xbf16, #tpu.memory_space<vmem>>, vector<32x32xbf16>
    %cst_43 = arith.constant dense<0.000000e+00> : vector<8x32xf32>
    %143 = tpu.matmul %141, %142, %cst_43 {dimension_numbers = #tpu.dot_dimension_numbers<[1], [0], [0], [1], [0, 0, 1, 1], [], []>} : vector<8x32xbf16>, vector<32x32xbf16>, vector<8x32xf32> -> vector<8x32xf32>
    %c0_44 = arith.constant 0 : index
    %c0_45 = arith.constant 0 : index
    %144 = vector.load %arg5[%c0_44, %c0_45] : memref<1x32xf32, #tpu.memory_space<vmem>>, vector<1x32xf32>
    %145 = vector.broadcast %144 : vector<1x32xf32> to vector<8x32xf32>
    %146 = arith.addf %143, %145 : vector<8x32xf32>
    %147 = arith.addf %1, %146 : vector<8x32xf32>
    %c0_46 = arith.constant 0 : index
    %c0_47 = arith.constant 0 : index
    %148 = vector.load %arg10[%c0_46, %c0_47] : memref<1x32xf32, #tpu.memory_space<vmem>>, vector<1x32xf32>
    %c0_48 = arith.constant 0 : index
    %c0_49 = arith.constant 0 : index
    %149 = vector.load %arg11[%c0_48, %c0_49] : memref<1x32xf32, #tpu.memory_space<vmem>>, vector<1x32xf32>
    %cst_50 = arith.constant dense<0.000000e+00> : vector<8xf32>
    %150 = vector.multi_reduction <add>, %147, %cst_50 [1] : vector<8x32xf32> to vector<8xf32>
    %151 = vector.shape_cast %150 : vector<8xf32> to vector<8x1xf32>
    %cst_51 = arith.constant 3.200000e+01 : f32
    %152 = vector.broadcast %cst_51 : f32 to vector<8x1xf32>
    %153 = arith.divf %151, %152 : vector<8x1xf32>
    %154 = vector.broadcast %153 : vector<8x1xf32> to vector<8x32xf32>
    %155 = arith.subf %147, %154 : vector<8x32xf32>
    %156 = arith.mulf %155, %155 : vector<8x32xf32>
    %cst_52 = arith.constant dense<0.000000e+00> : vector<8xf32>
    %157 = vector.multi_reduction <add>, %156, %cst_52 [1] : vector<8x32xf32> to vector<8xf32>
    %158 = vector.shape_cast %157 : vector<8xf32> to vector<8x1xf32>
    %cst_53 = arith.constant 3.200000e+01 : f32
    %159 = vector.broadcast %cst_53 : f32 to vector<8x1xf32>
    %160 = arith.divf %158, %159 : vector<8x1xf32>
    %cst_54 = arith.constant 9.99999974E-6 : f32
    %161 = vector.broadcast %cst_54 : f32 to vector<8x1xf32>
    %162 = arith.addf %160, %161 : vector<8x1xf32>
    %163 = math.rsqrt %162 : vector<8x1xf32>
    %164 = vector.broadcast %153 : vector<8x1xf32> to vector<8x32xf32>
    %165 = arith.subf %147, %164 : vector<8x32xf32>
    %166 = vector.broadcast %163 : vector<8x1xf32> to vector<8x32xf32>
    %167 = arith.mulf %165, %166 : vector<8x32xf32>
    %168 = vector.broadcast %148 : vector<1x32xf32> to vector<8x32xf32>
    %169 = arith.mulf %167, %168 : vector<8x32xf32>
    %170 = vector.broadcast %149 : vector<1x32xf32> to vector<8x32xf32>
    %171 = arith.addf %169, %170 : vector<8x32xf32>
    %172 = arith.truncf %171 : vector<8x32xf32> to vector<8x32xbf16>
    %cst_55 = arith.constant 0.000000e+00 : f32
    %173 = vector.broadcast %cst_55 : f32 to vector<8x32xf32>
    %c0_56 = arith.constant 0 : index
    %c0_57 = arith.constant 0 : index
    %174 = vector.load %arg6[%c0_56, %c0_57] : memref<32x64xbf16, #tpu.memory_space<vmem>>, vector<32x64xbf16>
    %cst_58 = arith.constant dense<0.000000e+00> : vector<8x64xf32>
    %175 = tpu.matmul %172, %174, %cst_58 {dimension_numbers = #tpu.dot_dimension_numbers<[1], [0], [0], [1], [0, 0, 1, 1], [], []>} : vector<8x32xbf16>, vector<32x64xbf16>, vector<8x64xf32> -> vector<8x64xf32>
    %c0_59 = arith.constant 0 : index
    %c0_60 = arith.constant 0 : index
    %176 = vector.load %arg7[%c0_59, %c0_60] : memref<1x64xf32, #tpu.memory_space<vmem>>, vector<1x64xf32>
    %177 = vector.broadcast %176 : vector<1x64xf32> to vector<8x64xf32>
    %178 = arith.addf %175, %177 : vector<8x64xf32>
    %cst_61 = arith.constant 0.000000e+00 : f32
    %179 = vector.broadcast %cst_61 : f32 to vector<8x64xf32>
    %180 = arith.maximumf %178, %179 : vector<8x64xf32>
    %181 = arith.truncf %180 : vector<8x64xf32> to vector<8x64xbf16>
    %c0_62 = arith.constant 0 : index
    %c0_63 = arith.constant 0 : index
    %182 = vector.load %arg8[%c0_62, %c0_63] : memref<64x32xbf16, #tpu.memory_space<vmem>>, vector<64x32xbf16>
    %cst_64 = arith.constant dense<0.000000e+00> : vector<8x32xf32>
    %183 = tpu.matmul %181, %182, %cst_64 {dimension_numbers = #tpu.dot_dimension_numbers<[1], [0], [0], [1], [0, 0, 1, 1], [], []>} : vector<8x64xbf16>, vector<64x32xbf16>, vector<8x32xf32> -> vector<8x32xf32>
    %184 = arith.addf %173, %183 : vector<8x32xf32>
    %c0_65 = arith.constant 0 : index
    %c0_66 = arith.constant 0 : index
    %185 = vector.load %arg9[%c0_65, %c0_66] : memref<1x32xf32, #tpu.memory_space<vmem>>, vector<1x32xf32>
    %186 = vector.broadcast %185 : vector<1x32xf32> to vector<8x32xf32>
    %187 = arith.addf %184, %186 : vector<8x32xf32>
    %188 = arith.addf %171, %187 : vector<8x32xf32>
    %c0_67 = arith.constant 0 : index
    %c0_68 = arith.constant 0 : index
    %189 = vector.load %arg12[%c0_67, %c0_68] : memref<1x32xf32, #tpu.memory_space<vmem>>, vector<1x32xf32>
    %c0_69 = arith.constant 0 : index
    %c0_70 = arith.constant 0 : index
    %190 = vector.load %arg13[%c0_69, %c0_70] : memref<1x32xf32, #tpu.memory_space<vmem>>, vector<1x32xf32>
    %cst_71 = arith.constant dense<0.000000e+00> : vector<8xf32>
    %191 = vector.multi_reduction <add>, %188, %cst_71 [1] : vector<8x32xf32> to vector<8xf32>
    %192 = vector.shape_cast %191 : vector<8xf32> to vector<8x1xf32>
    %cst_72 = arith.constant 3.200000e+01 : f32
    %193 = vector.broadcast %cst_72 : f32 to vector<8x1xf32>
    %194 = arith.divf %192, %193 : vector<8x1xf32>
    %195 = vector.broadcast %194 : vector<8x1xf32> to vector<8x32xf32>
    %196 = arith.subf %188, %195 : vector<8x32xf32>
    %197 = arith.mulf %196, %196 : vector<8x32xf32>
    %cst_73 = arith.constant dense<0.000000e+00> : vector<8xf32>
    %198 = vector.multi_reduction <add>, %197, %cst_73 [1] : vector<8x32xf32> to vector<8xf32>
    %199 = vector.shape_cast %198 : vector<8xf32> to vector<8x1xf32>
    %cst_74 = arith.constant 3.200000e+01 : f32
    %200 = vector.broadcast %cst_74 : f32 to vector<8x1xf32>
    %201 = arith.divf %199, %200 : vector<8x1xf32>
    %cst_75 = arith.constant 9.99999974E-6 : f32
    %202 = vector.broadcast %cst_75 : f32 to vector<8x1xf32>
    %203 = arith.addf %201, %202 : vector<8x1xf32>
    %204 = math.rsqrt %203 : vector<8x1xf32>
    %205 = vector.broadcast %194 : vector<8x1xf32> to vector<8x32xf32>
    %206 = arith.subf %188, %205 : vector<8x32xf32>
    %207 = vector.broadcast %204 : vector<8x1xf32> to vector<8x32xf32>
    %208 = arith.mulf %206, %207 : vector<8x32xf32>
    %209 = vector.broadcast %189 : vector<1x32xf32> to vector<8x32xf32>
    %210 = arith.mulf %208, %209 : vector<8x32xf32>
    %211 = vector.broadcast %190 : vector<1x32xf32> to vector<8x32xf32>
    %212 = arith.addf %210, %211 : vector<8x32xf32>
    %213 = vector.shape_cast %212 : vector<8x32xf32> to vector<1x8x32xf32>
    %c0_76 = arith.constant 0 : index
    %c0_77 = arith.constant 0 : index
    %c0_78 = arith.constant 0 : index
    %214 = vector.load %arg14[%c0_76, %c0_77, %c0_78] : memref<1x8x32xf32, #tpu.memory_space<vmem>>, vector<1x8x32xf32>
    tpu.vector_store %arg14[%c0_76, %c0_77, %c0_78], %213 {strides = array<i32>} : memref<1x8x32xf32, #tpu.memory_space<vmem>>, vector<1x8x32xf32>,
    return
  }
  func.func @transform_0(%arg0: i32) -> (i32, i32, i32) {
    %c0_i32 = arith.constant 0 : i32
    %c0_i32_0 = arith.constant 0 : i32
    %c0_i32_1 = arith.constant 0 : i32
    return %arg0, %c0_i32, %c0_i32_0 : i32, i32, i32
  }
  func.func @transform_1(%arg0: i32) -> (i32, i32) {
    %c0_i32 = arith.constant 0 : i32
    %c0_i32_0 = arith.constant 0 : i32
    %c0_i32_1 = arith.constant 0 : i32
    return %c0_i32, %c0_i32_0 : i32, i32
  }
  func.func @transform_2(%arg0: i32) -> (i32, i32) {
    %c0_i32 = arith.constant 0 : i32
    %c0_i32_0 = arith.constant 0 : i32
    %c0_i32_1 = arith.constant 0 : i32
    return %c0_i32, %c0_i32_0 : i32, i32
  }
  func.func @transform_3(%arg0: i32) -> (i32, i32) {
    %c0_i32 = arith.constant 0 : i32
    %c0_i32_0 = arith.constant 0 : i32
    %c0_i32_1 = arith.constant 0 : i32
    return %c0_i32, %c0_i32_0 : i32, i32
  }
  func.func @transform_4(%arg0: i32) -> (i32, i32) {
    %c0_i32 = arith.constant 0 : i32
    %c0_i32_0 = arith.constant 0 : i32
    %c0_i32_1 = arith.constant 0 : i32
    return %c0_i32, %c0_i32_0 : i32, i32
  }
  func.func @transform_5(%arg0: i32) -> (i32, i32) {
    %c0_i32 = arith.constant 0 : i32
    %c0_i32_0 = arith.constant 0 : i32
    %c0_i32_1 = arith.constant 0 : i32
    return %c0_i32, %c0_i32_0 : i32, i32
  }
  func.func @transform_6(%arg0: i32) -> (i32, i32) {
    %c0_i32 = arith.constant 0 : i32
    %c0_i32_0 = arith.constant 0 : i32
    %c0_i32_1 = arith.constant 0 : i32
    return %c0_i32, %c0_i32_0 : i32, i32
  }
  func.func @transform_7(%arg0: i32) -> (i32, i32) {
    %c0_i32 = arith.constant 0 : i32
    %c0_i32_0 = arith.constant 0 : i32
    %c0_i32_1 = arith.constant 0 : i32
    return %c0_i32, %c0_i32_0 : i32, i32
  }
  func.func @transform_8(%arg0: i32) -> (i32, i32) {
    %c0_i32 = arith.constant 0 : i32
    %c0_i32_0 = arith.constant 0 : i32
    %c0_i32_1 = arith.constant 0 : i32
    return %c0_i32, %c0_i32_0 : i32, i32
  }
  func.func @transform_9(%arg0: i32) -> (i32, i32) {
    %c0_i32 = arith.constant 0 : i32
    %c0_i32_0 = arith.constant 0 : i32
    %c0_i32_1 = arith.constant 0 : i32
    return %c0_i32, %c0_i32_0 : i32, i32
  }
  func.func @transform_10(%arg0: i32) -> (i32, i32) {
    %c0_i32 = arith.constant 0 : i32
    %c0_i32_0 = arith.constant 0 : i32
    %c0_i32_1 = arith.constant 0 : i32
    return %c0_i32, %c0_i32_0 : i32, i32
  }
  func.func @transform_11(%arg0: i32) -> (i32, i32) {
    %c0_i32 = arith.constant 0 : i32
    %c0_i32_0 = arith.constant 0 : i32
    %c0_i32_1 = arith.constant 0 : i32
    return %c0_i32, %c0_i32_0 : i32, i32
  }
  func.func @transform_12(%arg0: i32) -> (i32, i32) {
    %c0_i32 = arith.constant 0 : i32
    %c0_i32_0 = arith.constant 0 : i32
    %c0_i32_1 = arith.constant 0 : i32
    return %c0_i32, %c0_i32_0 : i32, i32
  }
  func.func @transform_13(%arg0: i32) -> (i32, i32, i32) {
    %c0_i32 = arith.constant 0 : i32
    %c0_i32_0 = arith.constant 0 : i32
    %c0_i32_1 = arith.constant 0 : i32
    return %arg0, %c0_i32, %c0_i32_0 : i32, i32, i32
  }
}

</mosaic_0001>

<llo_original>
// kernel: tpu_custom_call.1
$region0: #{tpu_custom_call.1}
  #allocation0 [shape = 'u32[]', space=smem, size = 0x4, offset = 0x4, fixed_abs, tag = 'smem constant byte address 0x4 - core index']
  #allocation1 [shape = 'u32[72,128]{1,0:T(1,128)}', space=vmem, size = 0x9000, scoped, tag = 'internal scratch']
  #allocation2 [shape = 'bf16[8,32]{1,0:T(8,128)(2,1)}', space=vmem, size = 0x800, scoped, tag = 'scratch operand']
  %s0 = inlined_call_operand.vmem [shape: f32[2,8,32], index: 0, kind: input, shape index: {}]
  %s1 = inlined_call_operand.vmem [shape: bf16[32,96], index: 1, kind: input, shape index: {}]
  %s2 = inlined_call_operand.vmem [shape: f32[1,96], index: 2, kind: input, shape index: {}]
  %s3 = inlined_call_operand.vmem [shape: bf16[32,32], index: 3, kind: input, shape index: {}]
  %s4 = inlined_call_operand.vmem [shape: f32[1,32], index: 4, kind: input, shape index: {}]
  %s5 = inlined_call_operand.hbm [shape: bf16[32,64], index: 5, kind: input, shape index: {}]
  %s6 = inlined_call_operand.vmem [shape: f32[1,64], index: 6, kind: input, shape index: {}]
  %s7 = inlined_call_operand.vmem [shape: bf16[64,32], index: 7, kind: input, shape index: {}]
  %s8 = inlined_call_operand.vmem [shape: f32[1,32], index: 8, kind: input, shape index: {}]
  %s9 = inlined_call_operand.vmem [shape: f32[1,32], index: 9, kind: input, shape index: {}]
  %s10 = inlined_call_operand.vmem [shape: f32[1,32], index: 10, kind: input, shape index: {}]
  %s11 = inlined_call_operand.vmem [shape: f32[1,32], index: 11, kind: input, shape index: {}]
  %s12 = inlined_call_operand.vmem [shape: f32[1,32], index: 12, kind: input, shape index: {}]
  %s13 = inlined_call_operand.hbm [shape: f32[2,8,32], index: 13, kind: output, shape index: {}]
  %s14 = sld [smem:[#allocation0]]
  $region89: #{tpu_custom_call.1} parent=0
    _
  %s16 = ssub.s32 1, %s14
  %s17 = scalar_select 0, %s16, %s14
  $region1: #{tpu_custom_call.1} parent=0
    #allocation3 [shape = 'u8[8192]{0}', space=vmem, size = 0x2000, scoped, tag = 'input window, operand 5, single buffered']
    #allocation4 [shape = 's32[2]{0}', space=sflag, size = 0x8, scoped, tag = 'scoped memory for tpu_custom_call.1']
    #allocation5 [shape = 's32[2]{0}', space=sflag, size = 0x8, scoped, tag = 'scoped memory for tpu_custom_call.1']
    #allocation6 [shape = 'u8[8192]{0}', space=vmem, size = 0x2000, scoped, tag = 'output window, operand 0']
    %18 = vsyncpa [#allocation4], 0
    %19 = vsyncpa [#allocation5], 0
    %s20 = scalar_lea.sflag [#allocation5], 1
    %21 = vsyncpa %s20, 0
    loop: start=0, step=1, limit=4
    $region2: #{tpu_custom_call.1} parent=1 // loop_pre_header
      _
    $region3: #{tpu_custom_call.1} parent=1 // loop_header
      %s23 = sphi 0, %s27
      %p24 = scmp.ge.s32.totalorder %s23, 4
      %s33 = sphi 0, %s35
      %s36 = sphi 0, %s33
      %s37 = sphi 0, %s36
      %s53 = sphi 0, %s37
      %s57 = sphi 0, %s57
      %s59 = sphi 0, %s57
      %s60 = sphi 0, %s59
      %s74 = sphi 0, %s60
      %s78 = sphi 0, %s78
      %s80 = sphi 0, %s78
      %s81 = sphi 0, %s80
      %s95 = sphi 0, %s81
      %s99 = sphi 0, %s99
      %s101 = sphi 0, %s99
      %s102 = sphi 0, %s101
      %s116 = sphi 0, %s102
      %s120 = sphi 0, %s120
      %s122 = sphi 0, %s120
      %s123 = sphi 0, %s122
      %s137 = sphi 0, %s123
      %s141 = sphi 0, %s141
      %s143 = sphi 0, %s141
      %s144 = sphi 0, %s143
      %s158 = sphi 0, %s144
      %s162 = sphi 0, %s162
      %s164 = sphi 0, %s162
      %s165 = sphi 0, %s164
      %s179 = sphi 0, %s165
      %s183 = sphi 0, %s183
      %s185 = sphi 0, %s183
      %s186 = sphi 0, %s185
      %s200 = sphi 0, %s186
      %s204 = sphi 0, %s204
      %s206 = sphi 0, %s204
      %s207 = sphi 0, %s206
      %s221 = sphi 0, %s207
      %s225 = sphi 0, %s225
      %s227 = sphi 0, %s225
      %s228 = sphi 0, %s227
      %s242 = sphi 0, %s228
      %s246 = sphi 0, %s246
      %s248 = sphi 0, %s246
      %s249 = sphi 0, %s248
      %s263 = sphi 0, %s249
      %s267 = sphi 0, %s267
      %s269 = sphi 0, %s267
      %s270 = sphi 0, %s269
      %s284 = sphi 0, %s270
      %s288 = sphi 0, %s288
      %s290 = sphi 0, %s288
      %s291 = sphi 0, %s290
      %s305 = sphi 0, %s291
      %s311 = sphi 0, %s313
      %s314 = sphi 0, %s311
      %s315 = sphi 0, %s314
      %s331 = sphi 0, %s315
    $region4: #{tpu_custom_call.1} parent=1 // loop_header_branch
      %26 = sbr.rel (%p24) target = $region8
    $region5: #{tpu_custom_call.1} parent=1 // loop_body
      %s28 = ssub.s32 %s23, 1
      %s29 = ssub.s32 %s23, 2
      %s30 = sadd.s32 %s23, 1
      %s31 = ssub.s32 %s23, %s30
      %p32 = scmp.eq.s32.totalorder %s31, 0
      %s34 = sadd.s32 %s33, 1
      %s35 = scalar_select %p32, %s33, %s34
      %p38 = pneg %p32
      %p39 = scmp.eq.s32.totalorder %s23, 1
      %p40 = por %p38, %p39
      %p41 = scmp.ne.s32.totalorder %s33, %s36
      %p42 = scmp.eq.s32.totalorder %s23, 0
      %p43 = por %p41, %p42
      %p44 = scmp.ne.s32.totalorder %s33, %s36
      %p45 = scmp.eq.s32.totalorder %s28, 1
      %p46 = por %p44, %p45
      %p47 = scmp.ne.s32.totalorder %s36, %s37
      %p48 = scmp.eq.s32.totalorder %s28, 0
      %p49 = por %p47, %p48
      %p50 = scmp.ne.s32.totalorder %s36, %s37
      %p51 = scmp.eq.s32.totalorder %s29, 1
      %p52 = por %p50, %p51
      %p54 = scmp.ne.s32.totalorder %s37, %s53
      %p55 = scmp.eq.s32.totalorder %s29, 0
      %p56 = por %p54, %p55
      %s58 = sadd.s32 %s57, 1
      %p61 = scmp.eq.s32.totalorder %s23, 1
      %p62 = scmp.ne.s32.totalorder %s57, %s59
      %p63 = scmp.eq.s32.totalorder %s23, 0
      %p64 = por %p62, %p63
      %p65 = scmp.ne.s32.totalorder %s57, %s59
      %p66 = scmp.eq.s32.totalorder %s28, 1
      %p67 = por %p65, %p66
      %p68 = scmp.ne.s32.totalorder %s59, %s60
      %p69 = scmp.eq.s32.totalorder %s28, 0
      %p70 = por %p68, %p69
      %p71 = scmp.ne.s32.totalorder %s59, %s60
      %p72 = scmp.eq.s32.totalorder %s29, 1
      %p73 = por %p71, %p72
      %p75 = scmp.ne.s32.totalorder %s60, %s74
      %p76 = scmp.eq.s32.totalorder %s29, 0
      %p77 = por %p75, %p76
      %s79 = sadd.s32 %s78, 1
      %p82 = scmp.eq.s32.totalorder %s23, 1
      %p83 = scmp.ne.s32.totalorder %s78, %s80
      %p84 = scmp.eq.s32.totalorder %s23, 0
      %p85 = por %p83, %p84
      %p86 = scmp.ne.s32.totalorder %s78, %s80
      %p87 = scmp.eq.s32.totalorder %s28, 1
      %p88 = por %p86, %p87
      %p89 = scmp.ne.s32.totalorder %s80, %s81
      %p90 = scmp.eq.s32.totalorder %s28, 0
      %p91 = por %p89, %p90
      %p92 = scmp.ne.s32.totalorder %s80, %s81
      %p93 = scmp.eq.s32.totalorder %s29, 1
      %p94 = por %p92, %p93
      %p96 = scmp.ne.s32.totalorder %s81, %s95
      %p97 = scmp.eq.s32.totalorder %s29, 0
      %p98 = por %p96, %p97
      %s100 = sadd.s32 %s99, 1
      %p103 = scmp.eq.s32.totalorder %s23, 1
      %p104 = scmp.ne.s32.totalorder %s99, %s101
      %p105 = scmp.eq.s32.totalorder %s23, 0
      %p106 = por %p104, %p105
      %p107 = scmp.ne.s32.totalorder %s99, %s101
      %p108 = scmp.eq.s32.totalorder %s28, 1
      %p109 = por %p107, %p108
      %p110 = scmp.ne.s32.totalorder %s101, %s102
      %p111 = scmp.eq.s32.totalorder %s28, 0
      %p112 = por %p110, %p111
      %p113 = scmp.ne.s32.totalorder %s101, %s102
      %p114 = scmp.eq.s32.totalorder %s29, 1
      %p115 = por %p113, %p114
      %p117 = scmp.ne.s32.totalorder %s102, %s116
      %p118 = scmp.eq.s32.totalorder %s29, 0
      %p119 = por %p117, %p118
      %s121 = sadd.s32 %s120, 1
      %p124 = scmp.eq.s32.totalorder %s23, 1
      %p125 = scmp.ne.s32.totalorder %s120, %s122
      %p126 = scmp.eq.s32.totalorder %s23, 0
      %p127 = por %p125, %p126
      %p128 = scmp.ne.s32.totalorder %s120, %s122
      %p129 = scmp.eq.s32.totalorder %s28, 1
      %p130 = por %p128, %p129
      %p131 = scmp.ne.s32.totalorder %s122, %s123
      %p132 = scmp.eq.s32.totalorder %s28, 0
      %p133 = por %p131, %p132
      %p134 = scmp.ne.s32.totalorder %s122, %s123
      %p135 = scmp.eq.s32.totalorder %s29, 1
      %p136 = por %p134, %p135
      %p138 = scmp.ne.s32.totalorder %s123, %s137
      %p139 = scmp.eq.s32.totalorder %s29, 0
      %p140 = por %p138, %p139
      %s142 = sadd.s32 %s141, 1
      %p145 = scmp.eq.s32.totalorder %s23, 1
      %p146 = scmp.ne.s32.totalorder %s141, %s143
      %p147 = scmp.eq.s32.totalorder %s23, 0
      %p148 = por %p146, %p147
      %p149 = scmp.ne.s32.totalorder %s141, %s143
      %p150 = scmp.eq.s32.totalorder %s28, 1
      %p151 = por %p149, %p150
      %p152 = scmp.ne.s32.totalorder %s143, %s144
      %p153 = scmp.eq.s32.totalorder %s28, 0
      %p154 = por %p152, %p153
      %p155 = scmp.ne.s32.totalorder %s143, %s144
      %p156 = scmp.eq.s32.totalorder %s29, 1
      %p157 = por %p155, %p156
      %p159 = scmp.ne.s32.totalorder %s144, %s158
      %p160 = scmp.eq.s32.totalorder %s29, 0
      %p161 = por %p159, %p160
      %s163 = sadd.s32 %s162, 1
      %p166 = scmp.eq.s32.totalorder %s23, 1
      %p167 = scmp.ne.s32.totalorder %s162, %s164
      %p168 = scmp.eq.s32.totalorder %s23, 0
      %p169 = por %p167, %p168
      %p170 = scmp.ne.s32.totalorder %s162, %s164
      %p171 = scmp.eq.s32.totalorder %s28, 1
      %p172 = por %p170, %p171
      %p173 = scmp.ne.s32.totalorder %s164, %s165
      %p174 = scmp.eq.s32.totalorder %s28, 0
      %p175 = por %p173, %p174
      %p176 = scmp.ne.s32.totalorder %s164, %s165
      %p177 = scmp.eq.s32.totalorder %s29, 1
      %p178 = por %p176, %p177
      %p180 = scmp.ne.s32.totalorder %s165, %s179
      %p181 = scmp.eq.s32.totalorder %s29, 0
      %p182 = por %p180, %p181
      %s184 = sadd.s32 %s183, 1
      %p187 = scmp.eq.s32.totalorder %s23, 1
      %p188 = scmp.ne.s32.totalorder %s183, %s185
      %p189 = scmp.eq.s32.totalorder %s23, 0
      %p190 = por %p188, %p189
      %p191 = scmp.ne.s32.totalorder %s183, %s185
      %p192 = scmp.eq.s32.totalorder %s28, 1
      %p193 = por %p191, %p192
      %p194 = scmp.ne.s32.totalorder %s185, %s186
      %p195 = scmp.eq.s32.totalorder %s28, 0
      %p196 = por %p194, %p195
      %p197 = scmp.ne.s32.totalorder %s185, %s186
      %p198 = scmp.eq.s32.totalorder %s29, 1
      %p199 = por %p197, %p198
      %p201 = scmp.ne.s32.totalorder %s186, %s200
      %p202 = scmp.eq.s32.totalorder %s29, 0
      %p203 = por %p201, %p202
      %s205 = sadd.s32 %s204, 1
      %p208 = scmp.eq.s32.totalorder %s23, 1
      %p209 = scmp.ne.s32.totalorder %s204, %s206
      %p210 = scmp.eq.s32.totalorder %s23, 0
      %p211 = por %p209, %p210
      %p212 = scmp.ne.s32.totalorder %s204, %s206
      %p213 = scmp.eq.s32.totalorder %s28, 1
      %p214 = por %p212, %p213
      %p215 = scmp.ne.s32.totalorder %s206, %s207
      %p216 = scmp.eq.s32.totalorder %s28, 0
      %p217 = por %p215, %p216
      %p218 = scmp.ne.s32.totalorder %s206, %s207
      %p219 = scmp.eq.s32.totalorder %s29, 1
      %p220 = por %p218, %p219
      %p222 = scmp.ne.s32.totalorder %s207, %s221
      %p223 = scmp.eq.s32.totalorder %s29, 0
      %p224 = por %p222, %p223
      %s226 = sadd.s32 %s225, 1
      %p229 = scmp.eq.s32.totalorder %s23, 1
      %p230 = scmp.ne.s32.totalorder %s225, %s227
      %p231 = scmp.eq.s32.totalorder %s23, 0
      %p232 = por %p230, %p231
      %p233 = scmp.ne.s32.totalorder %s225, %s227
      %p234 = scmp.eq.s32.totalorder %s28, 1
      %p235 = por %p233, %p234
      %p236 = scmp.ne.s32.totalorder %s227, %s228
      %p237 = scmp.eq.s32.totalorder %s28, 0
      %p238 = por %p236, %p237
      %p239 = scmp.ne.s32.totalorder %s227, %s228
      %p240 = scmp.eq.s32.totalorder %s29, 1
      %p241 = por %p239, %p240
      %p243 = scmp.ne.s32.totalorder %s228, %s242
      %p244 = scmp.eq.s32.totalorder %s29, 0
      %p245 = por %p243, %p244
      %s247 = sadd.s32 %s246, 1
      %p250 = scmp.eq.s32.totalorder %s23, 1
      %p251 = scmp.ne.s32.totalorder %s246, %s248
      %p252 = scmp.eq.s32.totalorder %s23, 0
      %p253 = por %p251, %p252
      %p254 = scmp.ne.s32.totalorder %s246, %s248
      %p255 = scmp.eq.s32.totalorder %s28, 1
      %p256 = por %p254, %p255
      %p257 = scmp.ne.s32.totalorder %s248, %s249
      %p258 = scmp.eq.s32.totalorder %s28, 0
      %p259 = por %p257, %p258
      %p260 = scmp.ne.s32.totalorder %s248, %s249
      %p261 = scmp.eq.s32.totalorder %s29, 1
      %p262 = por %p260, %p261
      %p264 = scmp.ne.s32.totalorder %s249, %s263
      %p265 = scmp.eq.s32.totalorder %s29, 0
      %p266 = por %p264, %p265
      %s268 = sadd.s32 %s267, 1
      %p271 = scmp.eq.s32.totalorder %s23, 1
      %p272 = scmp.ne.s32.totalorder %s267, %s269
      %p273 = scmp.eq.s32.totalorder %s23, 0
      %p274 = por %p272, %p273
      %p275 = scmp.ne.s32.totalorder %s267, %s269
      %p276 = scmp.eq.s32.totalorder %s28, 1
      %p277 = por %p275, %p276
      %p278 = scmp.ne.s32.totalorder %s269, %s270
      %p279 = scmp.eq.s32.totalorder %s28, 0
      %p280 = por %p278, %p279
      %p281 = scmp.ne.s32.totalorder %s269, %s270
      %p282 = scmp.eq.s32.totalorder %s29, 1
      %p283 = por %p281, %p282
      %p285 = scmp.ne.s32.totalorder %s270, %s284
      %p286 = scmp.eq.s32.totalorder %s29, 0
      %p287 = por %p285, %p286
      %s289 = sadd.s32 %s288, 1
      %p292 = scmp.eq.s32.totalorder %s23, 1
      %p293 = scmp.ne.s32.totalorder %s288, %s290
      %p294 = scmp.eq.s32.totalorder %s23, 0
      %p295 = por %p293, %p294
      %p296 = scmp.ne.s32.totalorder %s288, %s290
      %p297 = scmp.eq.s32.totalorder %s28, 1
      %p298 = por %p296, %p297
      %p299 = scmp.ne.s32.totalorder %s290, %s291
      %p300 = scmp.eq.s32.totalorder %s28, 0
      %p301 = por %p299, %p300
      %p302 = scmp.ne.s32.totalorder %s290, %s291
      %p303 = scmp.eq.s32.totalorder %s29, 1
      %p304 = por %p302, %p303
      %p306 = scmp.ne.s32.totalorder %s291, %s305
      %p307 = scmp.eq.s32.totalorder %s29, 0
      %p308 = por %p306, %p307
      %s309 = ssub.s32 %s23, %s30
      %p310 = scmp.eq.s32.totalorder %s309, 0
      %s312 = sadd.s32 %s311, 1
      %s313 = scalar_select %p310, %s311, %s312
      %p316 = pneg %p310
      %p317 = scmp.eq.s32.totalorder %s23, 1
      %p318 = por %p316, %p317
      %p319 = scmp.ne.s32.totalorder %s311, %s314
      %p320 = scmp.eq.s32.totalorder %s23, 0
      %p321 = por %p319, %p320
      %p322 = scmp.ne.s32.totalorder %s311, %s314
      %p323 = scmp.eq.s32.totalorder %s28, 1
      %p324 = por %p322, %p323
      %p325 = scmp.ne.s32.totalorder %s314, %s315
      %p326 = scmp.eq.s32.totalorder %s28, 0
      %p327 = por %p325, %p326
      %p328 = scmp.ne.s32.totalorder %s314, %s315
      %p329 = scmp.eq.s32.totalorder %s29, 1
      %p330 = por %p328, %p329
      %p332 = scmp.ne.s32.totalorder %s315, %s331
      %p333 = scmp.eq.s32.totalorder %s29, 0
      %p334 = por %p332, %p333
      %p335 = scmp.le.s32.totalorder 1, %s23
      %p336 = scmp.lt.s32.totalorder %s23, 3
      %p337 = pnand %p335, %p336
      %p338 = pneg %p337
      // Predicated region
      $region9: #{tpu_custom_call.1} parent=5 // pred_check
        _
      $region10: #{tpu_custom_call.1} parent=5 // pred_check_branch
        %340 = sbr.rel (%p337) target = $region12
      $region11: #{tpu_custom_call.1} parent=5 // pred_region
        %s341 = ssub.s32 %s23, 1
        // Predicated region
        $region13: #{tpu_custom_call.1} parent=11 // pred_check
          %p342 = pneg %p70
        $region14: #{tpu_custom_call.1} parent=11 // pred_check_branch
          %344 = sbr.rel (%p342) target = $region16
        $region15: #{tpu_custom_call.1} parent=11 // pred_region
          _
        $region16: #{tpu_custom_call.1} parent=11 // pred_fallthru
          _
        // Predicated region
        $region17: #{tpu_custom_call.1} parent=11 // pred_check
          %p345 = pneg %p91
        $region18: #{tpu_custom_call.1} parent=11 // pred_check_branch
          %347 = sbr.rel (%p345) target = $region20
        $region19: #{tpu_custom_call.1} parent=11 // pred_region
          _
        $region20: #{tpu_custom_call.1} parent=11 // pred_fallthru
          _
        // Predicated region
        $region21: #{tpu_custom_call.1} parent=11 // pred_check
          %p348 = pneg %p112
        $region22: #{tpu_custom_call.1} parent=11 // pred_check_branch
          %350 = sbr.rel (%p348) target = $region24
        $region23: #{tpu_custom_call.1} parent=11 // pred_region
          _
        $region24: #{tpu_custom_call.1} parent=11 // pred_fallthru
          _
        // Predicated region
        $region25: #{tpu_custom_call.1} parent=11 // pred_check
          %p351 = pneg %p133
        $region26: #{tpu_custom_call.1} parent=11 // pred_check_branch
          %353 = sbr.rel (%p351) target = $region28
        $region27: #{tpu_custom_call.1} parent=11 // pred_region
          _
        $region28: #{tpu_custom_call.1} parent=11 // pred_fallthru
          _
        // Predicated region
        $region29: #{tpu_custom_call.1} parent=11 // pred_check
          %p354 = pneg %p154
        $region30: #{tpu_custom_call.1} parent=11 // pred_check_branch
          %356 = sbr.rel (%p354) target = $region32
        $region31: #{tpu_custom_call.1} parent=11 // pred_region
          %358 = vsyncadd [#allocation4], 0
          %s359 = sshll.u32 %s5, 4
          %s360 = int_to_ptr.hbm [resolvable:$true] %s359
          %s361 = sshll.u32 [#allocation3], 4
          %s362 = int_to_ptr.vmem [resolvable:$true] %s361
          %367 = dma.hbm_to_vmem [thread:$0]  %s360, 256, %s362, [#allocation4], 64, 64, 4
        $region32: #{tpu_custom_call.1} parent=11 // pred_fallthru
          _
        // Predicated region
        $region33: #{tpu_custom_call.1} parent=11 // pred_check
          %p368 = pneg %p175
        $region34: #{tpu_custom_call.1} parent=11 // pred_check_branch
          %370 = sbr.rel (%p368) target = $region36
        $region35: #{tpu_custom_call.1} parent=11 // pred_region
          _
        $region36: #{tpu_custom_call.1} parent=11 // pred_fallthru
          _
        // Predicated region
        $region37: #{tpu_custom_call.1} parent=11 // pred_check
          %p371 = pneg %p196
        $region38: #{tpu_custom_call.1} parent=11 // pred_check_branch
          %373 = sbr.rel (%p371) target = $region40
        $region39: #{tpu_custom_call.1} parent=11 // pred_region
          _
        $region40: #{tpu_custom_call.1} parent=11 // pred_fallthru
          _
        // Predicated region
        $region41: #{tpu_custom_call.1} parent=11 // pred_check
          %p374 = pneg %p217
        $region42: #{tpu_custom_call.1} parent=11 // pred_check_branch
          %376 = sbr.rel (%p374) target = $region44
        $region43: #{tpu_custom_call.1} parent=11 // pred_region
          _
        $region44: #{tpu_custom_call.1} parent=11 // pred_fallthru
          _
        // Predicated region
        $region45: #{tpu_custom_call.1} parent=11 // pred_check
          %p377 = pneg %p238
        $region46: #{tpu_custom_call.1} parent=11 // pred_check_branch
          %379 = sbr.rel (%p377) target = $region48
        $region47: #{tpu_custom_call.1} parent=11 // pred_region
          _
        $region48: #{tpu_custom_call.1} parent=11 // pred_fallthru
          _
        // Predicated region
        $region49: #{tpu_custom_call.1} parent=11 // pred_check
          %p380 = pneg %p259
        $region50: #{tpu_custom_call.1} parent=11 // pred_check_branch
          %382 = sbr.rel (%p380) target = $region52
        $region51: #{tpu_custom_call.1} parent=11 // pred_region
          _
        $region52: #{tpu_custom_call.1} parent=11 // pred_fallthru
          _
        // Predicated region
        $region53: #{tpu_custom_call.1} parent=11 // pred_check
          %p383 = pneg %p280
        $region54: #{tpu_custom_call.1} parent=11 // pred_check_branch
          %385 = sbr.rel (%p383) target = $region56
        $region55: #{tpu_custom_call.1} parent=11 // pred_region
          _
        $region56: #{tpu_custom_call.1} parent=11 // pred_fallthru
          _
        // Predicated region
        $region57: #{tpu_custom_call.1} parent=11 // pred_check
          %p386 = pneg %p301
        $region58: #{tpu_custom_call.1} parent=11 // pred_check_branch
          %388 = sbr.rel (%p386) target = $region60
        $region59: #{tpu_custom_call.1} parent=11 // pred_region
          _
        $region60: #{tpu_custom_call.1} parent=11 // pred_fallthru
          _
      $region12: #{tpu_custom_call.1} parent=5 // pred_fallthru
        _
      %p389 = scmp.lt.s32.totalorder %s23, 2
      // Predicated region
      $region61: #{tpu_custom_call.1} parent=5 // pred_check
        %p390 = pneg %p389
      $region62: #{tpu_custom_call.1} parent=5 // pred_check_branch
        %392 = sbr.rel (%p390) target = $region64
      $region63: #{tpu_custom_call.1} parent=5 // pred_region
        // Predicated region
        $region65: #{tpu_custom_call.1} parent=63 // pred_check
          %p393 = pneg %p43
        $region66: #{tpu_custom_call.1} parent=63 // pred_check_branch
          %395 = sbr.rel (%p393) target = $region68
        $region67: #{tpu_custom_call.1} parent=63 // pred_region
          %p396 = scmp.lt.s32.totalorder %s23, 1
          %s397 = scalar_select %p396, %s23, 1
          %s398 = smul.addr %s397, 8
          %s399 = scalar_lea.vmem %s0, %s398
        $region68: #{tpu_custom_call.1} parent=63 // pred_fallthru
          _
      $region64: #{tpu_custom_call.1} parent=5 // pred_fallthru
        _
      %p400 = scmp.le.s32.totalorder 1, %s23
      %p401 = scmp.lt.s32.totalorder %s23, 3
      %p402 = pnand %p400, %p401
      %p403 = pneg %p402
      // Predicated region
      $region69: #{tpu_custom_call.1} parent=5 // pred_check
        _
      $region70: #{tpu_custom_call.1} parent=5 // pred_check_branch
        %405 = sbr.rel (%p402) target = $region72
      $region71: #{tpu_custom_call.1} parent=5 // pred_region
        %s406 = ssub.s32 %s23, 1
        // Predicated region
        $region73: #{tpu_custom_call.1} parent=71 // pred_check
          %p407 = pneg %p154
        $region74: #{tpu_custom_call.1} parent=71 // pred_check_branch
          %409 = sbr.rel (%p407) target = $region76
        $region75: #{tpu_custom_call.1} parent=71 // pred_region
          %411 = dma.done [#allocation4], 256
        $region76: #{tpu_custom_call.1} parent=71 // pred_fallthru
          _
        %p412 = scmp.lt.s32.totalorder %s28, 1
        %s413 = scalar_select %p412, %s28, 1
        %s414 = smul.addr %s413, 8
        %s415 = scalar_lea.vmem %s0, %s414
        %p416 = pneg %p49
        %p417 = pneg %p46
        %p418 = pneg %p70
        %p419 = pneg %p67
        %p420 = pneg %p91
        %p421 = pneg %p88
        %p422 = pneg %p112
        %p423 = pneg %p109
        %p424 = pneg %p133
        %p425 = pneg %p130
        %p426 = pneg %p154
        %p427 = pneg %p151
        %p428 = pneg %p175
        %p429 = pneg %p172
        %p430 = pneg %p196
        %p431 = pneg %p193
        %p432 = pneg %p217
        %p433 = pneg %p214
        %p434 = pneg %p238
        %p435 = pneg %p235
        %p436 = pneg %p259
        %p437 = pneg %p256
        %p438 = pneg %p280
        %p439 = pneg %p277
        %p440 = pneg %p301
        %p441 = pneg %p298
        %p442 = pneg %p327
        %p443 = pneg %p324
        %s444 = sand.u32 %s314, 1
        %s445 = scalar_lea.sflag [#allocation5], %s444
        %s446 = sand.u32 %s314, 1
        %s447 = smul.addr %s446, 8
        %s448 = scalar_lea.vmem [#allocation6], %s447
        %p449 = scmp.lt.s32.totalorder %s28, 1
        %s450 = scalar_select %p449, %s28, 1
        %s451 = smul.addr %s450, 8
        %s452 = scalar_lea.vmem %s0, %s451
        %v454 = vld [vmem:[%s452] sm:$0xff]
        %v455 = vpack.c.bf16 %v454, %v454
        %v456 = vld [vmem:[%s1] sm:$0xf]
        %v457 = vld [vmem:[%s1 + $0x4] sm:$0xf]
        %v458 = vld [vmem:[%s1 + $0x8] sm:$0xf]
        %v459 = vld [vmem:[%s1 + $0xc] sm:$0xf]
        %v460 = vld [vmem:[%s2] sm:$0x1]
        %v462 = vperm.slane %v460, 0
        %v468 = vunpack.c.l.b16 %v456
        %v469 = vunpack.c.l.b16 %v457
        %v470 = vunpack.c.l.b16 %v458
        %v471 = vunpack.c.l.b16 %v459
        %v472 = vpack.c.b16 %v469, %v468
        %v473 = vpack.c.b16 %v471, %v470
        %vm476 = vcmask 261120
        %v478 = vsel %vm476, %v455, 0
        %480 = vmatpush.bf16.msra.mxu0 0
        %481 = vmatpush.bf16.msra.mxu0 0
        %482 = vmatpush.bf16.msra.mxu0 0
        %483 = vmatpush.bf16.msra.mxu0 0
        %484 = vmatpush.bf16.msra.mxu0 0
        %485 = vmatpush.bf16.msra.mxu0 0
        %486 = vmatpush.bf16.msra.mxu0 %v473
        %487 = vmatpush.bf16.msra.mxu0 %v472
        %488 = vmatmul.bf16.gmra.mxu0 %v478
        %v489 = vpop.f32.mrf.mxu0
        %v490 = vadd.f32 %v462, %v489
        %v491 = vpop.f32.mrf.mxu0
        %492 = vdwg.mxu0
        %v493 = vpack.c.bf16 %v490, %v490
        %v495 = vunpack.c.l.b16 %v493
        %v496 = vpack.c.b16 %v495, %v495
        %497 = vrot.lane.b32.xlu0 %v496, 96
        %v498 = vpop.permute.xlu0 %497
        %vm499 = vcmask 64512
        %v501 = vsel %vm499, %v493, 0
        %v504 = vsel %vm499, %v498, 0
        %506 = vmatpush.bf16.xpose.msra.mxu0 0
        %507 = vmatpush.bf16.xpose.msra.mxu0 0
        %508 = vmatpush.bf16.xpose.msra.mxu0 0
        %509 = vmatpush.bf16.xpose.msra.mxu0 0
        %510 = vmatpush.bf16.xpose.msra.mxu0 0
        %511 = vmatpush.bf16.xpose.msra.mxu0 0
        %512 = vmatpush.bf16.xpose.msra.mxu0 0
        %513 = vmatpush.bf16.xpose.msra.mxu0 %v504
        %514 = vmatmul.bf16.gmra.mxu0 %v501
        %v515 = vpop.f32.mrf.mxu0
        %v516 = vadd.f32 0.0, %v515
        %v517 = vpop.f32.mrf.mxu0
        %518 = vdwg.mxu0
        %v519 = vsel %vm499, %v516, -inf
        %520 = vmax.xlane.f32.xlu0 %v519
        %v521 = vpop.xlane.xlu0 %520
        %v522 = vmax.f32 %v521, -1e+30
        %v523 = vsub.f32 -1e+30, %v522
        %v524 = vmul.f32 %v523, 1.442695
        %v525 = vpow.pop %v524
        %v526 = vsub.f32 %v516, %v522
        %v527 = vmul.f32 %v526, 1.442695
        %v528 = vpow.pop %v527
        %v529 = vmul.f32 %v525, 0.0
        %v530 = vsel %vm499, %v528, 0.0
        %531 = vadd.xlane.f32.xlu0 %v530
        %v532 = vpop.xlane.xlu0 %531
        %v533 = vadd.f32 %v529, %v532
        %v534 = vpack.c.bf16 %v528, %v528
        %535 = vrot.lane.b32.xlu0 %v496, 64
        %v536 = vpop.permute.xlu0 %535
        %v538 = vsel %vm499, %v534, 0
        %vm540 = vcmask 1043456
        %v542 = vsel %vm540, %v536, 0
        %544 = vmatpush.bf16.msra.mxu0 0
        %545 = vmatpush.bf16.msra.mxu0 0
        %546 = vmatpush.bf16.msra.mxu0 0
        %547 = vmatpush.bf16.msra.mxu0 0
        %548 = vmatpush.bf16.msra.mxu0 0
        %549 = vmatpush.bf16.msra.mxu0 0
        %550 = vmatpush.bf16.msra.mxu0 0
        %551 = vmatpush.bf16.msra.mxu0 %v542
        %552 = vmatmul.bf16.gmra.mxu0 %v538
        %v553 = vpop.f32.mrf.mxu0
        %v554 = vadd.f32 0.0, %v553
        %v555 = vpop.f32.mrf.mxu0
        %556 = vdwg.mxu0
        %v557 = vadd.f32 %v529, %v554
        %v558 = vrcp.pop %v533
        %v559 = vmul.f32 %v533, %v558
        %v560 = vsub.f32 1.0, %v559
        %v561 = vmul.f32 %v558, %v560
        %v562 = vadd.f32 %v558, %v561
        %vm563 = vweird.f32 %v533
        %vm564 = vweird.f32 %v558
        %vm565 = vmor %vm563, %vm564
        %v566 = vsel %vm565, %v558, %v562
        %v567 = vand.u32 2147483647, %v533
        %vm568 = vcmp.eq.f32.partialorder %v567, 8.507059e+37
        %v569 = vand.u32 %v533, 2147483648
        %v570 = vor.u32 1.1754944e-38, %v569
        %v571 = vsel %vm568, %v570, %v566
        %v572 = vmul.f32 %v557, %v571
        %v573 = vpack.c.bf16 %v572, %v572
        %vm574 = vcmask 60416
        %575 = vst.msk [vmem:[#allocation2] sm:$0xf] %vm574, %v573
        %576 = vrot.lane.b32.xlu0 %v496, 120
        %v577 = vpop.permute.xlu0 %576
        %578 = vrot.lane.b32.xlu0 %v496, 88
        %v579 = vpop.permute.xlu0 %578
        %v581 = vsel %vm499, %v577, 0
        %v584 = vsel %vm499, %v579, 0
        %586 = vmatpush.bf16.xpose.msra.mxu0 0
        %587 = vmatpush.bf16.xpose.msra.mxu0 0
        %588 = vmatpush.bf16.xpose.msra.mxu0 0
        %589 = vmatpush.bf16.xpose.msra.mxu0 0
        %590 = vmatpush.bf16.xpose.msra.mxu0 0
        %591 = vmatpush.bf16.xpose.msra.mxu0 0
        %592 = vmatpush.bf16.xpose.msra.mxu0 0
        %593 = vmatpush.bf16.xpose.msra.mxu0 %v584
        %594 = vmatmul.bf16.gmra.mxu0 %v581
        %v595 = vpop.f32.mrf.mxu0
        %v596 = vadd.f32 0.0, %v595
        %v597 = vpop.f32.mrf.mxu0
        %598 = vdwg.mxu0
        %v599 = vsel %vm499, %v596, -inf
        %600 = vmax.xlane.f32.xlu0 %v599
        %v601 = vpop.xlane.xlu0 %600
        %v602 = vmax.f32 %v601, -1e+30
        %v603 = vsub.f32 -1e+30, %v602
        %v604 = vmul.f32 %v603, 1.442695
        %v605 = vpow.pop %v604
        %v606 = vsub.f32 %v596, %v602
        %v607 = vmul.f32 %v606, 1.442695
        %v608 = vpow.pop %v607
        %v609 = vmul.f32 %v605, 0.0
        %v610 = vsel %vm499, %v608, 0.0
        %611 = vadd.xlane.f32.xlu0 %v610
        %v612 = vpop.xlane.xlu0 %611
        %v613 = vadd.f32 %v609, %v612
        %v614 = vpack.c.bf16 %v608, %v608
        %615 = vrot.lane.b32.xlu0 %v496, 56
        %v616 = vpop.permute.xlu0 %615
        %v618 = vsel %vm499, %v614, 0
        %v621 = vsel %vm540, %v616, 0
        %623 = vmatpush.bf16.msra.mxu0 0
        %624 = vmatpush.bf16.msra.mxu0 0
        %625 = vmatpush.bf16.msra.mxu0 0
        %626 = vmatpush.bf16.msra.mxu0 0
        %627 = vmatpush.bf16.msra.mxu0 0
        %628 = vmatpush.bf16.msra.mxu0 0
        %629 = vmatpush.bf16.msra.mxu0 0
        %630 = vmatpush.bf16.msra.mxu0 %v621
        %631 = vmatmul.bf16.gmra.mxu0 %v618
        %v632 = vpop.f32.mrf.mxu0
        %v633 = vadd.f32 0.0, %v632
        %v634 = vpop.f32.mrf.mxu0
        %635 = vdwg.mxu0
        %v636 = vadd.f32 %v609, %v633
        %v637 = vrcp.pop %v613
        %v638 = vmul.f32 %v613, %v637
        %v639 = vsub.f32 1.0, %v638
        %v640 = vmul.f32 %v637, %v639
        %v641 = vadd.f32 %v637, %v640
        %vm642 = vweird.f32 %v613
        %vm643 = vweird.f32 %v637
        %vm644 = vmor %vm642, %vm643
        %v645 = vsel %vm644, %v637, %v641
        %v646 = vand.u32 2147483647, %v613
        %vm647 = vcmp.eq.f32.partialorder %v646, 8.507059e+37
        %v648 = vand.u32 %v613, 2147483648
        %v649 = vor.u32 1.1754944e-38, %v648
        %v650 = vsel %vm647, %v649, %v645
        %v651 = vmul.f32 %v636, %v650
        %v652 = vpack.c.bf16 %v651, %v651
        %654 = vrot.lane.b32.xlu0 %v652, 8
        %v655 = vpop.permute.xlu0 %654
        %vm657 = vcmask 126016
        %658 = vst.msk [vmem:[#allocation2] sm:$0xf] %vm657, %v655
        %659 = vrot.lane.b32.xlu0 %v496, 112
        %v660 = vpop.permute.xlu0 %659
        %661 = vrot.lane.b32.xlu0 %v496, 80
        %v662 = vpop.permute.xlu0 %661
        %v664 = vsel %vm499, %v660, 0
        %v667 = vsel %vm499, %v662, 0
        %669 = vmatpush.bf16.xpose.msra.mxu0 0
        %670 = vmatpush.bf16.xpose.msra.mxu0 0
        %671 = vmatpush.bf16.xpose.msra.mxu0 0
        %672 = vmatpush.bf16.xpose.msra.mxu0 0
        %673 = vmatpush.bf16.xpose.msra.mxu0 0
        %674 = vmatpush.bf16.xpose.msra.mxu0 0
        %675 = vmatpush.bf16.xpose.msra.mxu0 0
        %676 = vmatpush.bf16.xpose.msra.mxu0 %v667
        %677 = vmatmul.bf16.gmra.mxu0 %v664
        %v678 = vpop.f32.mrf.mxu0
        %v679 = vadd.f32 0.0, %v678
        %v680 = vpop.f32.mrf.mxu0
        %681 = vdwg.mxu0
        %v682 = vsel %vm499, %v679, -inf
        %683 = vmax.xlane.f32.xlu0 %v682
        %v684 = vpop.xlane.xlu0 %683
        %v685 = vmax.f32 %v684, -1e+30
        %v686 = vsub.f32 -1e+30, %v685
        %v687 = vmul.f32 %v686, 1.442695
        %v688 = vpow.pop %v687
        %v689 = vsub.f32 %v679, %v685
        %v690 = vmul.f32 %v689, 1.442695
        %v691 = vpow.pop %v690
        %v692 = vmul.f32 %v688, 0.0
        %v693 = vsel %vm499, %v691, 0.0
        %694 = vadd.xlane.f32.xlu0 %v693
        %v695 = vpop.xlane.xlu0 %694
        %v696 = vadd.f32 %v692, %v695
        %v697 = vpack.c.bf16 %v691, %v691
        %698 = vrot.lane.b32.xlu0 %v496, 48
        %v699 = vpop.permute.xlu0 %698
        %v701 = vsel %vm499, %v697, 0
        %v704 = vsel %vm540, %v699, 0
        %706 = vmatpush.bf16.msra.mxu0 0
        %707 = vmatpush.bf16.msra.mxu0 0
        %708 = vmatpush.bf16.msra.mxu0 0
        %709 = vmatpush.bf16.msra.mxu0 0
        %710 = vmatpush.bf16.msra.mxu0 0
        %711 = vmatpush.bf16.msra.mxu0 0
        %712 = vmatpush.bf16.msra.mxu0 0
        %713 = vmatpush.bf16.msra.mxu0 %v704
        %714 = vmatmul.bf16.gmra.mxu0 %v701
        %v715 = vpop.f32.mrf.mxu0
        %v716 = vadd.f32 0.0, %v715
        %v717 = vpop.f32.mrf.mxu0
        %718 = vdwg.mxu0
        %v719 = vadd.f32 %v692, %v716
        %v720 = vrcp.pop %v696
        %v721 = vmul.f32 %v696, %v720
        %v722 = vsub.f32 1.0, %v721
        %v723 = vmul.f32 %v720, %v722
        %v724 = vadd.f32 %v720, %v723
        %vm725 = vweird.f32 %v696
        %vm726 = vweird.f32 %v720
        %vm727 = vmor %vm725, %vm726
        %v728 = vsel %vm727, %v720, %v724
        %v729 = vand.u32 2147483647, %v696
        %vm730 = vcmp.eq.f32.partialorder %v729, 8.507059e+37
        %v731 = vand.u32 %v696, 2147483648
        %v732 = vor.u32 1.1754944e-38, %v731
        %v733 = vsel %vm730, %v732, %v728
        %v734 = vmul.f32 %v719, %v733
        %v735 = vpack.c.bf16 %v734, %v734
        %737 = vrot.lane.b32.xlu0 %v735, 16
        %v738 = vpop.permute.xlu0 %737
        %vm740 = vcmask 191616
        %741 = vst.msk [vmem:[#allocation2] sm:$0xf] %vm740, %v738
        %742 = vrot.lane.b32.xlu0 %v496, 104
        %v743 = vpop.permute.xlu0 %742
        %744 = vrot.lane.b32.xlu0 %v496, 72
        %v745 = vpop.permute.xlu0 %744
        %v747 = vsel %vm499, %v743, 0
        %v750 = vsel %vm499, %v745, 0
        %752 = vmatpush.bf16.xpose.msra.mxu0 0
        %753 = vmatpush.bf16.xpose.msra.mxu0 0
        %754 = vmatpush.bf16.xpose.msra.mxu0 0
        %755 = vmatpush.bf16.xpose.msra.mxu0 0
        %756 = vmatpush.bf16.xpose.msra.mxu0 0
        %757 = vmatpush.bf16.xpose.msra.mxu0 0
        %758 = vmatpush.bf16.xpose.msra.mxu0 0
        %759 = vmatpush.bf16.xpose.msra.mxu0 %v750
        %760 = vmatmul.bf16.gmra.mxu0 %v747
        %v761 = vpop.f32.mrf.mxu0
        %v762 = vadd.f32 0.0, %v761
        %v763 = vpop.f32.mrf.mxu0
        %764 = vdwg.mxu0
        %v765 = vsel %vm499, %v762, -inf
        %766 = vmax.xlane.f32.xlu0 %v765
        %v767 = vpop.xlane.xlu0 %766
        %v768 = vmax.f32 %v767, -1e+30
        %v769 = vsub.f32 -1e+30, %v768
        %v770 = vmul.f32 %v769, 1.442695
        %v771 = vpow.pop %v770
        %v772 = vsub.f32 %v762, %v768
        %v773 = vmul.f32 %v772, 1.442695
        %v774 = vpow.pop %v773
        %v775 = vmul.f32 %v771, 0.0
        %v776 = vsel %vm499, %v774, 0.0
        %777 = vadd.xlane.f32.xlu0 %v776
        %v778 = vpop.xlane.xlu0 %777
        %v779 = vadd.f32 %v775, %v778
        %v780 = vpack.c.bf16 %v774, %v774
        %781 = vrot.lane.b32.xlu0 %v496, 40
        %v782 = vpop.permute.xlu0 %781
        %v784 = vsel %vm499, %v780, 0
        %v787 = vsel %vm540, %v782, 0
        %789 = vmatpush.bf16.msra.mxu0 0
        %790 = vmatpush.bf16.msra.mxu0 0
        %791 = vmatpush.bf16.msra.mxu0 0
        %792 = vmatpush.bf16.msra.mxu0 0
        %793 = vmatpush.bf16.msra.mxu0 0
        %794 = vmatpush.bf16.msra.mxu0 0
        %795 = vmatpush.bf16.msra.mxu0 0
        %796 = vmatpush.bf16.msra.mxu0 %v787
        %797 = vmatmul.bf16.gmra.mxu0 %v784
        %v798 = vpop.f32.mrf.mxu0
        %v799 = vadd.f32 0.0, %v798
        %v800 = vpop.f32.mrf.mxu0
        %801 = vdwg.mxu0
        %v802 = vadd.f32 %v775, %v799
        %v803 = vrcp.pop %v779
        %v804 = vmul.f32 %v779, %v803
        %v805 = vsub.f32 1.0, %v804
        %v806 = vmul.f32 %v803, %v805
        %v807 = vadd.f32 %v803, %v806
        %vm808 = vweird.f32 %v779
        %vm809 = vweird.f32 %v803
        %vm810 = vmor %vm808, %vm809
        %v811 = vsel %vm810, %v803, %v807
        %v812 = vand.u32 2147483647, %v779
        %vm813 = vcmp.eq.f32.partialorder %v812, 8.507059e+37
        %v814 = vand.u32 %v779, 2147483648
        %v815 = vor.u32 1.1754944e-38, %v814
        %v816 = vsel %vm813, %v815, %v811
        %v817 = vmul.f32 %v802, %v816
        %v818 = vpack.c.bf16 %v817, %v817
        %820 = vrot.lane.b32.xlu0 %v818, 24
        %v821 = vpop.permute.xlu0 %820
        %vm823 = vcmask 257216
        %824 = vst.msk [vmem:[#allocation2] sm:$0xf] %vm823, %v821
        %v825 = vld [vmem:[#allocation2] sm:$0xf]
        %v826 = vld [vmem:[%s3] sm:$0xf]
        %v827 = vld [vmem:[%s3 + $0x4] sm:$0xf]
        %v828 = vld [vmem:[%s3 + $0x8] sm:$0xf]
        %v829 = vld [vmem:[%s3 + $0xc] sm:$0xf]
        %v830 = vld [vmem:[%s4] sm:$0x1]
        %v832 = vperm.slane %v830, 0
        %v838 = vunpack.c.l.b16 %v826
        %v839 = vunpack.c.l.b16 %v827
        %v840 = vunpack.c.l.b16 %v828
        %v841 = vunpack.c.l.b16 %v829
        %v842 = vpack.c.b16 %v839, %v838
        %v843 = vpack.c.b16 %v841, %v840
        %v847 = vsel %vm476, %v825, 0
        %849 = vmatpush.bf16.msra.mxu0 0
        %850 = vmatpush.bf16.msra.mxu0 0
        %851 = vmatpush.bf16.msra.mxu0 0
        %852 = vmatpush.bf16.msra.mxu0 0
        %853 = vmatpush.bf16.msra.mxu0 0
        %854 = vmatpush.bf16.msra.mxu0 0
        %855 = vmatpush.bf16.msra.mxu0 %v843
        %856 = vmatpush.bf16.msra.mxu0 %v842
        %857 = vmatmul.bf16.gmra.mxu0 %v847
        %v858 = vpop.f32.mrf.mxu0
        %v859 = vadd.f32 %v832, %v858
        %v860 = vpop.f32.mrf.mxu0
        %861 = vdwg.mxu0
        %v862 = vadd.f32 %v454, %v859
        %v863 = vld [vmem:[%s9] sm:$0x1]
        %v864 = vld [vmem:[%s10] sm:$0x1]
        %v865 = vsel %vm476, %v862, 0.0
        %866 = vadd.xlane.f32.xlu0 %v865
        %v867 = vpop.xlane.xlu0 %866
        %v868 = vrcp.pop 32.0
        %v869 = vmul.f32 32.0, %v868
        %v870 = vsub.f32 1.0, %v869
        %v871 = vmul.f32 %v868, %v870
        %v872 = vadd.f32 %v868, %v871
        %vm873 = vweird.f32 %v868
        %v874 = vsel %vm873, %v868, %v872
        %v875 = vmul.f32 %v867, %v874
        %v876 = vsub.f32 %v862, %v875
        %v877 = vmul.f32 %v876, %v876
        %v878 = vsel %vm476, %v877, 0.0
        %879 = vadd.xlane.f32.xlu0 %v878
        %v880 = vpop.xlane.xlu0 %879
        %v881 = vmul.f32 %v880, %v874
        %v882 = vadd.f32 %v881, 1e-05
        %v883 = vrsqrt.pop %v882
        %v884 = vmul.f32 %v883, %v882
        %v885 = vmul.f32 %v884, %v883
        %v886 = vmul.f32 0.5, %v885
        %v887 = vsub.f32 1.5, %v886
        %v888 = vmul.f32 %v883, %v887
        %vm889 = vweird.f32 %v882
        %vm890 = vweird.f32 %v883
        %vm891 = vmor %vm889, %vm890
        %v892 = vsel %vm891, %v883, %v888
        %v893 = vmul.f32 %v876, %v892
        %v895 = vperm.slane %v863, 0
        %v897 = vmul.f32 %v893, %v895
        %v899 = vperm.slane %v864, 0
        %v901 = vadd.f32 %v897, %v899
        %v902 = vpack.c.bf16 %v901, %v901
        %v903 = vld [vmem:[#allocation3] sm:$0xf]
        %v904 = vld [vmem:[#allocation3 + $0x4] sm:$0xf]
        %v905 = vld [vmem:[#allocation3 + $0x8] sm:$0xf]
        %v906 = vld [vmem:[#allocation3 + $0xc] sm:$0xf]
        %v907 = vld [vmem:[%s6] sm:$0x1]
        %v909 = vperm.slane %v907, 0
        %v915 = vunpack.c.l.b16 %v903
        %v916 = vunpack.c.l.b16 %v904
        %v917 = vunpack.c.l.b16 %v905
        %v918 = vunpack.c.l.b16 %v906
        %v919 = vpack.c.b16 %v916, %v915
        %v920 = vpack.c.b16 %v918, %v917
        %v924 = vsel %vm476, %v902, 0
        %926 = vmatpush.bf16.msra.mxu0 0
        %927 = vmatpush.bf16.msra.mxu0 0
        %928 = vmatpush.bf16.msra.mxu0 0
        %929 = vmatpush.bf16.msra.mxu0 0
        %930 = vmatpush.bf16.msra.mxu0 0
        %931 = vmatpush.bf16.msra.mxu0 0
        %932 = vmatpush.bf16.msra.mxu0 %v920
        %933 = vmatpush.bf16.msra.mxu0 %v919
        %934 = vmatmul.bf16.gmra.mxu0 %v924
        %v935 = vpop.f32.mrf.mxu0
        %v936 = vadd.f32 %v909, %v935
        %v937 = vpop.f32.mrf.mxu0
        %938 = vdwg.mxu0
        %v939 = vmax.f32 %v936, 0.0
        %v940 = vpack.c.bf16 %v939, %v939
        %v941 = vld [vmem:[%s7] sm:$0xf]
        %v942 = vld [vmem:[%s7 + $0x4] sm:$0xf]
        %v943 = vld [vmem:[%s7 + $0x8] sm:$0xf]
        %v944 = vld [vmem:[%s7 + $0xc] sm:$0xf]
        %v945 = vld [vmem:[%s7 + $0x10] sm:$0xf]
        %v946 = vld [vmem:[%s7 + $0x14] sm:$0xf]
        %v947 = vld [vmem:[%s7 + $0x18] sm:$0xf]
        %v948 = vld [vmem:[%s7 + $0x1c] sm:$0xf]
        %v949 = vld [vmem:[%s8] sm:$0x1]
        %v951 = vperm.slane %v949, 0
        %v961 = vunpack.c.l.b16 %v941
        %v962 = vunpack.c.l.b16 %v942
        %v963 = vunpack.c.l.b16 %v943
        %v964 = vunpack.c.l.b16 %v944
        %v965 = vunpack.c.l.b16 %v945
        %v966 = vunpack.c.l.b16 %v946
        %v967 = vunpack.c.l.b16 %v947
        %v968 = vunpack.c.l.b16 %v948
        %v969 = vpack.c.b16 %v962, %v961
        %v970 = vpack.c.b16 %v964, %v963
        %v971 = vpack.c.b16 %v966, %v965
        %v972 = vpack.c.b16 %v968, %v967
        %vm977 = vcmask 523264
        %v979 = vsel %vm977, %v940, 0
        %981 = vmatpush.bf16.msra.mxu0 0
        %982 = vmatpush.bf16.msra.mxu0 0
        %983 = vmatpush.bf16.msra.mxu0 0
        %984 = vmatpush.bf16.msra.mxu0 0
        %985 = vmatpush.bf16.msra.mxu0 %v972
        %986 = vmatpush.bf16.msra.mxu0 %v971
        %987 = vmatpush.bf16.msra.mxu0 %v970
        %988 = vmatpush.bf16.msra.mxu0 %v969
        %989 = vmatmul.bf16.gmra.mxu0 %v979
        %v990 = vpop.f32.mrf.mxu0
        %v991 = vadd.f32 %v951, %v990
        %v992 = vpop.f32.mrf.mxu0
        %993 = vdwg.mxu0
        %v994 = vadd.f32 %v901, %v991
        %v995 = vld [vmem:[%s11] sm:$0x1]
        %v996 = vld [vmem:[%s12] sm:$0x1]
        %v997 = vsel %vm476, %v994, 0.0
        %998 = vadd.xlane.f32.xlu0 %v997
        %v999 = vpop.xlane.xlu0 %998
        %v1000 = vmul.f32 %v999, %v874
        %v1001 = vsub.f32 %v994, %v1000
        %v1002 = vmul.f32 %v1001, %v1001
        %v1003 = vsel %vm476, %v1002, 0.0
        %1004 = vadd.xlane.f32.xlu0 %v1003
        %v1005 = vpop.xlane.xlu0 %1004
        %v1006 = vmul.f32 %v1005, %v874
        %v1007 = vadd.f32 %v1006, 1e-05
        %v1008 = vrsqrt.pop %v1007
        %v1009 = vmul.f32 %v1008, %v1007
        %v1010 = vmul.f32 %v1009, %v1008
        %v1011 = vmul.f32 0.5, %v1010
        %v1012 = vsub.f32 1.5, %v1011
        %v1013 = vmul.f32 %v1008, %v1012
        %vm1014 = vweird.f32 %v1007
        %vm1015 = vweird.f32 %v1008
        %vm1016 = vmor %vm1014, %vm1015
        %v1017 = vsel %vm1016, %v1008, %v1013
        %v1018 = vmul.f32 %v1001, %v1017
        %v1020 = vperm.slane %v995, 0
        %v1022 = vmul.f32 %v1018, %v1020
        %v1024 = vperm.slane %v996, 0
        %v1026 = vadd.f32 %v1022, %v1024
        %1027 = vst.msk [vmem:[%s448] sm:$0xff] %vm476, %v1026
        %s1028 = sand.u32 %s314, 1
        %s1029 = scalar_lea.sflag [#allocation5], %s1028
        %s1030 = sand.u32 %s314, 1
        %s1031 = smul.addr %s1030, 8
        %s1032 = scalar_lea.vmem [#allocation6], %s1031
        // Predicated region
        $region77: #{tpu_custom_call.1} parent=71 // pred_check
          %p1033 = pneg %p324
        $region78: #{tpu_custom_call.1} parent=71 // pred_check_branch
          %1035 = sbr.rel (%p1033) target = $region80
        $region79: #{tpu_custom_call.1} parent=71 // pred_region
          %1037 = vsyncadd %s1029, 0
          %s1038 = smul.addr %s28, 8
          %s1039 = scalar_lea.hbm %s13, %s1038
          %s1041 = sshll.u32 %s1032, 4
          %s1042 = int_to_ptr.vmem [resolvable:$true] %s1041
          %s1043 = sshll.u32 %s1039, 4
          %s1044 = int_to_ptr.hbm [resolvable:$true] %s1043
          %1046 = dma.vmem_to_hbm [thread:$0]  %s1042, 128, %s1044, %s1029
        $region80: #{tpu_custom_call.1} parent=71 // pred_fallthru
          _
      $region72: #{tpu_custom_call.1} parent=5 // pred_fallthru
        _
      %p1047 = scmp.le.s32.totalorder 2, %s23
      // Predicated region
      $region81: #{tpu_custom_call.1} parent=5 // pred_check
        %p1048 = pneg %p1047
      $region82: #{tpu_custom_call.1} parent=5 // pred_check_branch
        %1050 = sbr.rel (%p1048) target = $region84
      $region83: #{tpu_custom_call.1} parent=5 // pred_region
        %s1051 = ssub.s32 %s23, 2
        // Predicated region
        $region85: #{tpu_custom_call.1} parent=83 // pred_check
          %p1052 = pneg %p330
        $region86: #{tpu_custom_call.1} parent=83 // pred_check_branch
          %1054 = sbr.rel (%p1052) target = $region88
        $region87: #{tpu_custom_call.1} parent=83 // pred_region
          %s1055 = sand.u32 %s315, 1
          %s1056 = scalar_lea.sflag [#allocation5], %s1055
          %s1057 = sand.u32 %s315, 1
          %s1058 = smul.addr %s1057, 8
          %s1059 = scalar_lea.vmem [#allocation6], %s1058
          %1061 = dma.done %s1056, 128
        $region88: #{tpu_custom_call.1} parent=83 // pred_fallthru
          _
      $region84: #{tpu_custom_call.1} parent=5 // pred_fallthru
        _
    $region6: #{tpu_custom_call.1} parent=1 // loop_footer
      %s27 = sadd.s32 1, %s23
    $region7: #{tpu_custom_call.1} parent=1 // loop_footer_branch
      %22 = sbr.rel target = $region3
    $region8: #{tpu_custom_call.1} parent=1 // loop_exit
      _
    %1062 = vsyncpa [#allocation4], 1
    %s1063 = scalar_lea.sflag [#allocation4], 1
    %1064 = vsyncpa %s1063, 1
    %1065 = vsyncpa [#allocation5], 1
    %s1066 = scalar_lea.sflag [#allocation5], 1
    %1067 = vsyncpa %s1066, 1

</llo_original>
